<compile_context>
chip_gen: v5e
topology: v5e:2x2
jax: 0.10.0
libtpu: 0.0.40
codegen_flags: <defaults>
</compile_context>

<pallas_src>
import functools

import jax
import jax.numpy as jnp
from jax.experimental import pallas as pl
from jax.experimental.pallas import tpu as pltpu

EPS = 1e-5
LEAKINESS = 0.01
SUB_S_MAX = 8192                 # lanes per in-kernel compute sub-slice
_HEADROOM = 2 * 1024 * 1024      # Mosaic scratch headroom in the VMEM accounting


def _inc_conv_kernel(x_ref, w_ref, p_ref, o_ref,
                     mean_ref, m2_ref, scale_ref, shift_ref,
                     *, total_s, tile_s, sub_s, n_full, rem, unroll):
    # x_ref: (C_in, tile_s)  channels on sublanes, spatial chunk on lanes (lane-dense)
    # w_ref: (C_out, C_in)   1x1x1 conv weight
    # p_ref: (2, C_out, 1)   packed [gamma, beta] (f32); conv bias cancels under the norm
    # o_ref: (C_out, tile_s)
    # scratch (per-instance carry): running mean / M2, folded scale / shift
    phase = pl.program_id(1)
    s_idx = pl.program_id(2)
    chunk_start = s_idx * tile_s              # lanes processed before this DMA tile

    w = w_ref[...]

    def conv_sub(base, width):
        # 1x1x1 conv == channel matmul on the MXU; f32 accumulation regardless of dtype.
        x_sub = x_ref[:, pl.ds(base, width)]
        return jnp.dot(w, x_sub, preferred_element_type=jnp.float32)

    # ---------------- phase 0: per-channel (mean, M2) accumulation -------------------
    def stats_sub(base, width):
        y = conv_sub(base, width)                                     # (C_out, width) f32
        # Masked tail: lanes >= total_s (block padding past the end of S) are excluded.
        lane = chunk_start + base + jax.lax.broadcasted_iota(jnp.int32, y.shape, 1)
        mask = lane < total_s
        n_b_i = jnp.clip(total_s - (chunk_start + base), 0, width)    # valid lanes here
        n_a_i = jnp.minimum(chunk_start + base, total_s)              # exact count so far
        n_b = n_b_i.astype(jnp.float32)
        n_a = n_a_i.astype(jnp.float32)
        # TODO(synk): for S > 2^24 the f32 cast of the exact int counts loses ~1 ulp in
        # the Chan-combine weights; use a higher-precision combine if that matters.
        ym = jnp.where(mask, y, 0.0)
        c_mean = jnp.sum(ym, axis=1, keepdims=True) / jnp.maximum(n_b, 1.0)
        centered = jnp.where(mask, y - c_mean, 0.0)
        c_m2 = jnp.sum(centered * centered, axis=1, keepdims=True)
        inv = 1.0 / jnp.maximum(n_a + n_b, 1.0)
        delta = c_mean - mean_ref[...]
        mean_ref[...] = mean_ref[...] + delta * (n_b * inv)
        m2_ref[...] = m2_ref[...] + c_m2 + delta * delta * (n_a * n_b * inv)

    @pl.when(phase == 0)
    def _phase_stats():
        @pl.when(s_idx == 0)
        def _init():
            mean_ref[...] = jnp.zeros_like(mean_ref)
            m2_ref[...] = jnp.zeros_like(m2_ref)

        if n_full == 1:
            stats_sub(0, sub_s)
        else:
            def body(j, carry):
                stats_sub(pl.multiple_of(j * sub_s, sub_s), sub_s)
                return carry
            jax.lax.fori_loop(0, n_full, body, 0, unroll=unroll)
        if rem:
            stats_sub(n_full * sub_s, rem)      # static remainder sub-slice

    # ---------------- phase 1: conv + folded affine + LeakyReLU ----------------------
    def norm_sub(base, width):
        y = conv_sub(base, width)
        z = y * scale_ref[...] + shift_ref[...]                       # norm+affine fused
        o_ref[:, pl.ds(base, width)] = jnp.where(
            z >= 0, z, LEAKINESS * z).astype(o_ref.dtype)

    @pl.when(phase == 1)
    def _phase_norm():
        @pl.when(s_idx == 0)
        def _fold_affine():
            var = m2_ref[...] * (1.0 / float(total_s))                # biased variance
            scale = p_ref[0] * jax.lax.rsqrt(var + EPS)               # gamma*rsqrt(var+eps)
            scale_ref[...] = scale
            shift_ref[...] = p_ref[1] - mean_ref[...] * scale         # beta - mean*scale

        if n_full == 1:
            norm_sub(0, sub_s)
        else:
            def body(j, carry):
                norm_sub(pl.multiple_of(j * sub_s, sub_s), sub_s)
                return carry
            jax.lax.fori_loop(0, n_full, body, 0, unroll=unroll)
        if rem:
            norm_sub(n_full * sub_s, rem)


def _ceil_to(x, m):
    return (x + m - 1) // m * m


def _vmem_budget_bytes():
    """Generation-aware usable-VMEM budget for tiling."""
    try:
        cap = int(pltpu.get_tpu_info().vmem_capacity_bytes)
    except Exception:
        cap = 64 * 1024 * 1024                      # conservative fallback (v7x-sized)
    if cap >= 100 * 1024 * 1024:                    # v5e / v6e: 128 MiB physical
        return 96 * 1024 * 1024
    return 42 * 1024 * 1024                         # v7x: 64 MiB physical


def _plan_tiling(S, c_in, c_out, itemsize, budget_bytes, tile_s_override=None):
    """Pick the DMA tile (tile_s), in-kernel compute sub-slice (sub_s) and a VMEM
    limit, with accounting that includes sublane padding, double-buffered blocks,
    f32 in-kernel temporaries, weight/params/scratch and headroom."""
    pad = max(8, 32 // itemsize)                    # sublane packing multiple (8/16/32)
    cin_p = _ceil_to(c_in, pad)
    cout_p = _ceil_to(c_out, pad)
    cout_f32 = _ceil_to(c_out, 8)

    w_bytes = 2 * cout_p * _ceil_to(c_in, 128) * itemsize            # double-buffered
    p_bytes = 2 * 2 * cout_f32 * 128 * 4
    scratch_bytes = 4 * cout_f32 * 128 * 4
    fixed = w_bytes + p_bytes + scratch_bytes + _HEADROOM

    temp_per_lane = 4 * cout_f32 * 4                # f32 y / centered / z temporaries
    per_lane_blocks = 2 * (cin_p + cout_p) * itemsize  # double-buffered x + out blocks

    if tile_s_override is not None:
        tile_s = int(tile_s_override)
        assert tile_s <= S and (tile_s == S or tile_s % 128 == 0), \
            "tile_s must be a multiple of 128 or equal to S"
    else:
        temps_reserve = temp_per_lane * min(S, SUB_S_MAX)
        avail = budget_bytes - fixed - temps_reserve
        max_tile = max(128, avail // per_lane_blocks)
        if S <= max_tile:
            # Whole instance resident: the x block is DMA'd once and reused across
            # phase 0 and phase 1 (index map is phase-independent) — halves input reads.
            tile_s = S
        else:
            tile_s = max(128, min((max_tile // 128) * 128, 32768))

    sub_s = min(tile_s, SUB_S_MAX)
    n_full = tile_s // sub_s
    rem = tile_s % sub_s
    n_tiles = -(-S // tile_s)
    unroll = n_full <= 8

    vmem_bytes = fixed + temp_per_lane * sub_s + per_lane_blocks * tile_s
    vmem_limit = int(min(budget_bytes, max(vmem_bytes, 32 * 1024 * 1024)))
    return tile_s, sub_s, n_full, rem, n_tiles, unroll, vmem_limit


def inc_conv_pallas(x_ncdhw, weight, bias, gamma, beta, tile_s=None):
    """x_ncdhw: (N, C_in, D, H, W); weight: (C_out, C_in[,1,1,1]); bias/gamma/beta: (C_out,)"""
    N, C_in, D, H, W = x_ncdhw.shape
    C_out = weight.shape[0]
    S = D * H * W
    dtype = x_ncdhw.dtype

    # Native order, no transposes: (N, C_in, S) with spatial on the lane axis.
    x = x_ncdhw.reshape(N, C_in, S)
    w = weight.reshape(C_out, C_in).astype(dtype)
    del bias  # cancelled exactly by the instance-norm mean subtraction
    params = jnp.stack([gamma, beta]).astype(jnp.float32).reshape(2, C_out, 1)

    itemsize = jnp.dtype(dtype).itemsize
    budget = _vmem_budget_bytes()
    (tile_s, sub_s, n_full, rem, n_tiles, unroll, vmem_limit) = _plan_tiling(
        S, C_in, C_out, itemsize, budget, tile_s_override=tile_s)

    grid = (N, 2, n_tiles)   # (instance, phase: 0=stats / 1=normalize, spatial chunk)

    out = pl.pallas_call(
        functools.partial(_inc_conv_kernel, total_s=S, tile_s=tile_s, sub_s=sub_s,
                          n_full=n_full, rem=rem, unroll=unroll),
        out_shape=jax.ShapeDtypeStruct((N, C_out, S), dtype),
        grid_spec=pltpu.PrefetchScalarGridSpec(
            num_scalar_prefetch=0,
            grid=grid,
            in_specs=[
                # Phase-independent index map: with tile_s == S the block is revisited
                # (n,0,0) across both phases and is fetched from HBM only once.
                pl.BlockSpec((pl.Squeezed(), C_in, tile_s), lambda n, p, s: (n, 0, s)),
                pl.BlockSpec((C_out, C_in), lambda n, p, s: (0, 0)),
                pl.BlockSpec((2, C_out, 1), lambda n, p, s: (0, 0, 0)),
            ],
            # Phase 0 never stores; pin its (resident) output block at chunk 0.  Phase 1
            # s=0 fully overwrites that same block before its index ever changes, so no
            # unwritten block is ever flushed to HBM.
            out_specs=pl.BlockSpec((pl.Squeezed(), C_out, tile_s),
                                   lambda n, p, s: (n, 0, s * p)),
            scratch_shapes=[
                pltpu.VMEM((C_out, 1), jnp.float32),   # running mean
                pltpu.VMEM((C_out, 1), jnp.float32),   # running M2
                pltpu.VMEM((C_out, 1), jnp.float32),   # folded scale
                pltpu.VMEM((C_out, 1), jnp.float32),   # folded shift
            ],
        ),
        compiler_params=pltpu.CompilerParams(
            # N is the only data-parallel axis (phase/chunk axes carry the stats).
            # TODO(synk): on v7x with N==1, split each phase's S-chunks across the two
            # TensorCores and merge partial (mean, M2) via CMEM + core barrier.
            dimension_semantics=("parallel", "arbitrary", "arbitrary"),
            vmem_limit_bytes=vmem_limit,
        ),
    )(x, w, params)

    return out.reshape(N, C_out, D, H, W)


def inc_conv_ref(x_ncdhw, weight, bias, gamma, beta):
    """Pure-JAX reference of the PyTorch forward (training-mode instance norm).
    Keeps the conv bias to verify it is cancelled by the normalization."""
    N, C_in, D, H, W = x_ncdhw.shape
    C_out = weight.shape[0]
    x = x_ncdhw.reshape(N, C_in, -1).astype(jnp.float32)            # (N, C_in, S)
    w = weight.reshape(C_out, C_in).astype(jnp.float32)
    y = jnp.einsum("oc,ncs->nos", w, x) + bias[None, :, None]
    mean = jnp.mean(y, axis=2, keepdims=True)
    var = jnp.mean((y - mean) ** 2, axis=2, keepdims=True)
    yn = (y - mean) / jnp.sqrt(var + EPS)
    yn = yn * gamma[None, :, None] + beta[None, :, None]
    out = jnp.where(yn >= 0, yn, LEAKINESS * yn)
    return out.reshape(N, C_out, D, H, W).astype(x_ncdhw.dtype)


if __name__ == "__main__":
    key = jax.random.PRNGKey(0)
    (k_x, k_w, k_b, k_g, k_be, k_x2, k_w2, k_b2) = jax.random.split(key, 8)

    # Case A: small volume. Exercises the resident single-tile path, a forced
    # exactly-dividing chunked path, and a forced masked-tail chunked path.
    N, C_in, C_out = 2, 4, 8
    D = H = W = 16                       # S = 4096
    x = jax.random.normal(k_x, (N, C_in, D, H, W), dtype=jnp.float32)
    weight = jax.random.normal(k_w, (C_out, C_in), dtype=jnp.float32) * 0.1
    bias = jax.random.normal(k_b, (C_out,), dtype=jnp.float32) * 0.1
    gamma = 1.0 + 0.1 * jax.random.normal(k_g, (C_out,), dtype=jnp.float32)
    beta = 0.05 * jax.random.normal(k_be, (C_out,), dtype=jnp.float32)

    ref = inc_conv_ref(x, weight, bias, gamma, beta)
    out_auto = jax.block_until_ready(inc_conv_pallas(x, weight, bias, gamma, beta))
    out_chunk = jax.block_until_ready(
        inc_conv_pallas(x, weight, bias, gamma, beta, tile_s=512))     # exact chunks
    out_tail = jax.block_until_ready(
        inc_conv_pallas(x, weight, bias, gamma, beta, tile_s=1536))    # masked tail

    assert out_auto.shape == (N, C_out, D, H, W)
    assert jnp.allclose(out_auto, ref, atol=1e-4, rtol=1e-4), "auto-tile mismatch vs ref"
    assert jnp.allclose(out_chunk, ref, atol=1e-4, rtol=1e-4), "chunked mismatch vs ref"
    assert jnp.allclose(out_tail, ref, atol=1e-4, rtol=1e-4), "masked-tail mismatch vs ref"

    # Case B: S > SUB_S_MAX with odd channel counts — exercises the resident path's
    # in-kernel sub-slice loop + static remainder and sublane padding.
    N2, Ci2, Co2 = 1, 3, 5
    D2, H2, W2 = 20, 32, 32              # S = 20480 -> sub-slices 8192 + 8192 + 4096
    x2 = jax.random.normal(k_x2, (N2, Ci2, D2, H2, W2), dtype=jnp.float32)
    w2 = jax.random.normal(k_w2, (Co2, Ci2), dtype=jnp.float32) * 0.1
    b2 = jax.random.normal(k_b2, (Co2,), dtype=jnp.float32) * 0.1
    g2 = jnp.full((Co2,), 1.5, dtype=jnp.float32)
    be2 = jnp.full((Co2,), -0.25, dtype=jnp.float32)

    ref2 = inc_conv_ref(x2, w2, b2, g2, be2)
    out2 = jax.block_until_ready(inc_conv_pallas(x2, w2, b2, g2, be2))
    assert jnp.allclose(out2, ref2, atol=1e-4, rtol=1e-4), "sub-slice path mismatch vs ref"

    print("KERNEL_OK")
</pallas_src>

<mosaic_0001>
module attributes {stable_mosaic.version = 11 : i64} {
  func.func @_inc_conv_kernel(%arg0: i32, %arg1: i32, %arg2: i32, %arg3: memref<1x4x4096xf32, #tpu.memory_space<vmem>>, %arg4: memref<8x4xf32, #tpu.memory_space<vmem>>, %arg5: memref<2x8x1xf32, #tpu.memory_space<vmem>>, %arg6: memref<1x8x4096xf32, #tpu.memory_space<vmem>>, %arg7: memref<8x1xf32, #tpu.memory_space<vmem>>, %arg8: memref<8x1xf32, #tpu.memory_space<vmem>>, %arg9: memref<8x1xf32, #tpu.memory_space<vmem>>, %arg10: memref<8x1xf32, #tpu.memory_space<vmem>>) attributes {dimension_semantics = [#tpu.dimension_semantics<parallel>, #tpu.dimension_semantics<arbitrary>, #tpu.dimension_semantics<arbitrary>], iteration_bounds = array<i64: 2, 2, 1>, scalar_prefetch = 0 : i64, scratch_operands = 4 : i64, tpu.core_type = #tpu.core_type<tc>, window_params = [{transform_indices = @transform_0, window_bounds = array<i64: 1, 4, 4096>}, {pipeline_mode = #tpu.pipeline_mode<synchronous>, transform_indices = @transform_1, window_bounds = array<i64: 8, 4>}, {pipeline_mode = #tpu.pipeline_mode<synchronous>, transform_indices = @transform_2, window_bounds = array<i64: 2, 8, 1>}, {transform_indices = @transform_3, window_bounds = array<i64: 1, 8, 4096>}]} {
    %c4096_i32 = arith.constant 4096 : i32
    %0 = arith.muli %arg2, %c4096_i32 : i32
    %c0 = arith.constant 0 : index
    %c0_0 = arith.constant 0 : index
    %1 = vector.load %arg4[%c0, %c0_0] : memref<8x4xf32, #tpu.memory_space<vmem>>, vector<8x4xf32>
    %c0_i32 = arith.constant 0 : i32
    %2 = arith.cmpi eq, %arg1, %c0_i32 : i32
    %3 = arith.extui %2 : i1 to i32
    %c0_i32_1 = arith.constant 0 : i32
    %4 = arith.cmpi ne, %3, %c0_i32_1 : i32
    scf.if %4 {
      %c0_i32_3 = arith.constant 0 : i32
      %8 = arith.cmpi eq, %arg2, %c0_i32_3 : i32
      %9 = arith.extui %8 : i1 to i32
      %c0_i32_4 = arith.constant 0 : i32
      %10 = arith.cmpi ne, %9, %c0_i32_4 : i32
      scf.if %10 {
        %cst_33 = arith.constant 0.000000e+00 : f32
        %62 = vector.broadcast %cst_33 : f32 to vector<8x1xf32>
        %c0_34 = arith.constant 0 : index
        %c0_35 = arith.constant 0 : index
        %63 = vector.load %arg7[%c0_34, %c0_35] : memref<8x1xf32, #tpu.memory_space<vmem>>, vector<8x1xf32>
        tpu.vector_store %arg7[%c0_34, %c0_35], %62 {strides = array<i32>} : memref<8x1xf32, #tpu.memory_space<vmem>>, vector<8x1xf32>,
        %cst_36 = arith.constant 0.000000e+00 : f32
        %64 = vector.broadcast %cst_36 : f32 to vector<8x1xf32>
        %c0_37 = arith.constant 0 : index
        %c0_38 = arith.constant 0 : index
        %65 = vector.load %arg8[%c0_37, %c0_38] : memref<8x1xf32, #tpu.memory_space<vmem>>, vector<8x1xf32>
        tpu.vector_store %arg8[%c0_37, %c0_38], %64 {strides = array<i32>} : memref<8x1xf32, #tpu.memory_space<vmem>>, vector<8x1xf32>,
      } else {
      }
      %c0_5 = arith.constant 0 : index
      %c0_6 = arith.constant 0 : index
      %c0_7 = arith.constant 0 : index
      %11 = vector.load %arg3[%c0_5, %c0_6, %c0_7] : memref<1x4x4096xf32, #tpu.memory_space<vmem>>, vector<1x4x4096xf32>
      %12 = vector.shape_cast %11 : vector<1x4x4096xf32> to vector<4x4096xf32>
      %cst = arith.constant dense<0.000000e+00> : vector<8x4096xf32>
      %13 = tpu.matmul %1, %12, %cst {dimension_numbers = #tpu.dot_dimension_numbers<[1], [0], [0], [1], [0, 0, 1, 1], [], []>} : vector<8x4xf32>, vector<4x4096xf32>, vector<8x4096xf32> -> vector<8x4096xf32>
      %c0_i32_8 = arith.constant 0 : i32
      %14 = arith.addi %0, %c0_i32_8 : i32
      %15 = tpu.iota {dimensions = array<i32: 1>} : vector<8x4096xi32>
      %16 = vector.broadcast %14 : i32 to vector<8x4096xi32>
      %17 = arith.addi %16, %15 : vector<8x4096xi32>
      %c4096_i32_9 = arith.constant 4096 : i32
      %18 = vector.broadcast %c4096_i32_9 : i32 to vector<8x4096xi32>
      %19 = arith.cmpi slt, %17, %18 : vector<8x4096xi32>
      %c0_i32_10 = arith.constant 0 : i32
      %20 = arith.addi %0, %c0_i32_10 : i32
      %c4096_i32_11 = arith.constant 4096 : i32
      %21 = arith.subi %c4096_i32_11, %20 : i32
      %c0_i32_12 = arith.constant 0 : i32
      %c4096_i32_13 = arith.constant 4096 : i32
      %22 = arith.maxsi %c0_i32_12, %21 : i32
      %23 = arith.minsi %c4096_i32_13, %22 : i32
      %c0_i32_14 = arith.constant 0 : i32
      %24 = arith.addi %0, %c0_i32_14 : i32
      %c4096_i32_15 = arith.constant 4096 : i32
      %25 = arith.minsi %24, %c4096_i32_15 : i32
      %26 = arith.sitofp %23 : i32 to f32
      %27 = arith.sitofp %25 : i32 to f32
      %cst_16 = arith.constant 0.000000e+00 : f32
      %28 = vector.broadcast %cst_16 : f32 to vector<8x4096xf32>
      %29 = arith.select %19, %13, %28 : vector<8x4096xi1>, vector<8x4096xf32>
      %cst_17 = arith.constant dense<0.000000e+00> : vector<8xf32>
      %30 = vector.multi_reduction <add>, %29, %cst_17 [1] : vector<8x4096xf32> to vector<8xf32>
      %31 = vector.shape_cast %30 : vector<8xf32> to vector<8x1xf32>
      %cst_18 = arith.constant 1.000000e+00 : f32
      %32 = arith.maximumf %26, %cst_18 : f32
      %33 = vector.broadcast %32 : f32 to vector<8x1xf32>
      %34 = arith.divf %31, %33 : vector<8x1xf32>
      %35 = vector.broadcast %34 : vector<8x1xf32> to vector<8x4096xf32>
      %36 = arith.subf %13, %35 : vector<8x4096xf32>
      %cst_19 = arith.constant 0.000000e+00 : f32
      %37 = vector.broadcast %cst_19 : f32 to vector<8x4096xf32>
      %38 = arith.select %19, %36, %37 : vector<8x4096xi1>, vector<8x4096xf32>
      %39 = arith.mulf %38, %38 : vector<8x4096xf32>
      %cst_20 = arith.constant dense<0.000000e+00> : vector<8xf32>
      %40 = vector.multi_reduction <add>, %39, %cst_20 [1] : vector<8x4096xf32> to vector<8xf32>
      %41 = vector.shape_cast %40 : vector<8xf32> to vector<8x1xf32>
      %42 = arith.addf %27, %26 : f32
      %cst_21 = arith.constant 1.000000e+00 : f32
      %43 = arith.maximumf %42, %cst_21 : f32
      %cst_22 = arith.constant 1.000000e+00 : f32
      %44 = arith.divf %cst_22, %43 : f32
      %c0_23 = arith.constant 0 : index
      %c0_24 = arith.constant 0 : index
      %45 = vector.load %arg7[%c0_23, %c0_24] : memref<8x1xf32, #tpu.memory_space<vmem>>, vector<8x1xf32>
      %46 = arith.subf %34, %45 : vector<8x1xf32>
      %c0_25 = arith.constant 0 : index
      %c0_26 = arith.constant 0 : index
      %47 = vector.load %arg7[%c0_25, %c0_26] : memref<8x1xf32, #tpu.memory_space<vmem>>, vector<8x1xf32>
      %48 = arith.mulf %26, %44 : f32
      %49 = vector.broadcast %48 : f32 to vector<8x1xf32>
      %50 = arith.mulf %46, %49 : vector<8x1xf32>
      %51 = arith.addf %47, %50 : vector<8x1xf32>
      %c0_27 = arith.constant 0 : index
      %c0_28 = arith.constant 0 : index
      %52 = vector.load %arg7[%c0_27, %c0_28] : memref<8x1xf32, #tpu.memory_space<vmem>>, vector<8x1xf32>
      tpu.vector_store %arg7[%c0_27, %c0_28], %51 {strides = array<i32>} : memref<8x1xf32, #tpu.memory_space<vmem>>, vector<8x1xf32>,
      %c0_29 = arith.constant 0 : index
      %c0_30 = arith.constant 0 : index
      %53 = vector.load %arg8[%c0_29, %c0_30] : memref<8x1xf32, #tpu.memory_space<vmem>>, vector<8x1xf32>
      %54 = arith.addf %53, %41 : vector<8x1xf32>
      %55 = arith.mulf %46, %46 : vector<8x1xf32>
      %56 = arith.mulf %27, %26 : f32
      %57 = arith.mulf %56, %44 : f32
      %58 = vector.broadcast %57 : f32 to vector<8x1xf32>
      %59 = arith.mulf %55, %58 : vector<8x1xf32>
      %60 = arith.addf %54, %59 : vector<8x1xf32>
      %c0_31 = arith.constant 0 : index
      %c0_32 = arith.constant 0 : index
      %61 = vector.load %arg8[%c0_31, %c0_32] : memref<8x1xf32, #tpu.memory_space<vmem>>, vector<8x1xf32>
      tpu.vector_store %arg8[%c0_31, %c0_32], %60 {strides = array<i32>} : memref<8x1xf32, #tpu.memory_space<vmem>>, vector<8x1xf32>,
    } else {
    }
    %c1_i32 = arith.constant 1 : i32
    %5 = arith.cmpi eq, %arg1, %c1_i32 : i32
    %6 = arith.extui %5 : i1 to i32
    %c0_i32_2 = arith.constant 0 : i32
    %7 = arith.cmpi ne, %6, %c0_i32_2 : i32
    scf.if %7 {
      %c0_i32_3 = arith.constant 0 : i32
      %8 = arith.cmpi eq, %arg2, %c0_i32_3 : i32
      %9 = arith.extui %8 : i1 to i32
      %c0_i32_4 = arith.constant 0 : i32
      %10 = arith.cmpi ne, %9, %c0_i32_4 : i32
      scf.if %10 {
        %c0_17 = arith.constant 0 : index
        %c0_18 = arith.constant 0 : index
        %28 = vector.load %arg8[%c0_17, %c0_18] : memref<8x1xf32, #tpu.memory_space<vmem>>, vector<8x1xf32>
        %cst_19 = arith.constant 2.44140625E-4 : f32
        %29 = vector.broadcast %cst_19 : f32 to vector<8x1xf32>
        %30 = arith.mulf %28, %29 : vector<8x1xf32>
        %c0_20 = arith.constant 0 : index
        %c0_21 = arith.constant 0 : index
        %c0_22 = arith.constant 0 : index
        %31 = vector.load %arg5[%c0_20, %c0_21, %c0_22] : memref<2x8x1xf32, #tpu.memory_space<vmem>>, vector<1x8x1xf32>
        %32 = vector.shape_cast %31 : vector<1x8x1xf32> to vector<8x1xf32>
        %cst_23 = arith.constant 9.99999974E-6 : f32
        %33 = vector.broadcast %cst_23 : f32 to vector<8x1xf32>
        %34 = arith.addf %30, %33 : vector<8x1xf32>
        %35 = math.rsqrt %34 : vector<8x1xf32>
        %36 = arith.mulf %32, %35 : vector<8x1xf32>
        %c0_24 = arith.constant 0 : index
        %c0_25 = arith.constant 0 : index
        %37 = vector.load %arg9[%c0_24, %c0_25] : memref<8x1xf32, #tpu.memory_space<vmem>>, vector<8x1xf32>
        tpu.vector_store %arg9[%c0_24, %c0_25], %36 {strides = array<i32>} : memref<8x1xf32, #tpu.memory_space<vmem>>, vector<8x1xf32>,
        %c1 = arith.constant 1 : index
        %c0_26 = arith.constant 0 : index
        %c0_27 = arith.constant 0 : index
        %38 = vector.load %arg5[%c1, %c0_26, %c0_27] : memref<2x8x1xf32, #tpu.memory_space<vmem>>, vector<1x8x1xf32>
        %39 = vector.shape_cast %38 : vector<1x8x1xf32> to vector<8x1xf32>
        %c0_28 = arith.constant 0 : index
        %c0_29 = arith.constant 0 : index
        %40 = vector.load %arg7[%c0_28, %c0_29] : memref<8x1xf32, #tpu.memory_space<vmem>>, vector<8x1xf32>
        %41 = arith.mulf %40, %36 : vector<8x1xf32>
        %42 = arith.subf %39, %41 : vector<8x1xf32>
        %c0_30 = arith.constant 0 : index
        %c0_31 = arith.constant 0 : index
        %43 = vector.load %arg10[%c0_30, %c0_31] : memref<8x1xf32, #tpu.memory_space<vmem>>, vector<8x1xf32>
        tpu.vector_store %arg10[%c0_30, %c0_31], %42 {strides = array<i32>} : memref<8x1xf32, #tpu.memory_space<vmem>>, vector<8x1xf32>,
      } else {
      }
      %c0_5 = arith.constant 0 : index
      %c0_6 = arith.constant 0 : index
      %c0_7 = arith.constant 0 : index
      %11 = vector.load %arg3[%c0_5, %c0_6, %c0_7] : memref<1x4x4096xf32, #tpu.memory_space<vmem>>, vector<1x4x4096xf32>
      %12 = vector.shape_cast %11 : vector<1x4x4096xf32> to vector<4x4096xf32>
      %cst = arith.constant dense<0.000000e+00> : vector<8x4096xf32>
      %13 = tpu.matmul %1, %12, %cst {dimension_numbers = #tpu.dot_dimension_numbers<[1], [0], [0], [1], [0, 0, 1, 1], [], []>} : vector<8x4xf32>, vector<4x4096xf32>, vector<8x4096xf32> -> vector<8x4096xf32>
      %c0_8 = arith.constant 0 : index
      %c0_9 = arith.constant 0 : index
      %14 = vector.load %arg9[%c0_8, %c0_9] : memref<8x1xf32, #tpu.memory_space<vmem>>, vector<8x1xf32>
      %15 = vector.broadcast %14 : vector<8x1xf32> to vector<8x4096xf32>
      %16 = arith.mulf %13, %15 : vector<8x4096xf32>
      %c0_10 = arith.constant 0 : index
      %c0_11 = arith.constant 0 : index
      %17 = vector.load %arg10[%c0_10, %c0_11] : memref<8x1xf32, #tpu.memory_space<vmem>>, vector<8x1xf32>
      %18 = vector.broadcast %17 : vector<8x1xf32> to vector<8x4096xf32>
      %19 = arith.addf %16, %18 : vector<8x4096xf32>
      %cst_12 = arith.constant 0.000000e+00 : f32
      %20 = vector.broadcast %cst_12 : f32 to vector<8x4096xf32>
      %21 = arith.cmpf oge, %19, %20 : vector<8x4096xf32>
      %cst_13 = arith.constant 0.00999999977 : f32
      %22 = vector.broadcast %cst_13 : f32 to vector<8x4096xf32>
      %23 = arith.mulf %22, %19 : vector<8x4096xf32>
      %24 = arith.select %21, %19, %23 : vector<8x4096xi1>, vector<8x4096xf32>
      %c0_14 = arith.constant 0 : index
      %c0_15 = arith.constant 0 : index
      %c0_16 = arith.constant 0 : index
      %25 = vector.load %arg6[%c0_14, %c0_15, %c0_16] : memref<1x8x4096xf32, #tpu.memory_space<vmem>>, vector<1x8x4096xf32>
      %26 = vector.shape_cast %25 : vector<1x8x4096xf32> to vector<8x4096xf32>
      %27 = vector.shape_cast %24 : vector<8x4096xf32> to vector<1x8x4096xf32>
      tpu.vector_store %arg6[%c0_14, %c0_15, %c0_16], %27 {strides = array<i32>} : memref<1x8x4096xf32, #tpu.memory_space<vmem>>, vector<1x8x4096xf32>,
    } else {
    }
    return
  }
  func.func @transform_0(%arg0: i32, %arg1: i32, %arg2: i32) -> (i32, i32, i32) {
    %c0_i32 = arith.constant 0 : i32
    %c0_i32_0 = arith.constant 0 : i32
    return %arg0, %c0_i32, %arg2 : i32, i32, i32
  }
  func.func @transform_1(%arg0: i32, %arg1: i32, %arg2: i32) -> (i32, i32) {
    %c0_i32 = arith.constant 0 : i32
    %c0_i32_0 = arith.constant 0 : i32
    %c0_i32_1 = arith.constant 0 : i32
    return %c0_i32, %c0_i32_0 : i32, i32
  }
  func.func @transform_2(%arg0: i32, %arg1: i32, %arg2: i32) -> (i32, i32, i32) {
    %c0_i32 = arith.constant 0 : i32
    %c0_i32_0 = arith.constant 0 : i32
    %c0_i32_1 = arith.constant 0 : i32
    %c0_i32_2 = arith.constant 0 : i32
    return %c0_i32, %c0_i32_0, %c0_i32_1 : i32, i32, i32
  }
  func.func @transform_3(%arg0: i32, %arg1: i32, %arg2: i32) -> (i32, i32, i32) {
    %0 = arith.muli %arg2, %arg1 : i32
    %c0_i32 = arith.constant 0 : i32
    %c0_i32_0 = arith.constant 0 : i32
    return %arg0, %c0_i32, %0 : i32, i32, i32
  }
}

</mosaic_0001>

<llo_original>
// kernel: tpu_custom_call.1
$region0: #{tpu_custom_call.1}
  #allocation0 [shape = 'u32[]', space=smem, size = 0x4, offset = 0x4, fixed_abs, tag = 'smem constant byte address 0x4 - core index']
  #allocation1 [shape = 'u32[72,128]{1,0:T(1,128)}', space=vmem, size = 0x9000, scoped, tag = 'internal scratch']
  #allocation2 [shape = 'f32[8,1]{1,0:T(8,128)}', space=vmem, size = 0x1000, scoped, tag = 'scratch operand']
  #allocation3 [shape = 'f32[8,1]{1,0:T(8,128)}', space=vmem, size = 0x1000, scoped, tag = 'scratch operand']
  #allocation4 [shape = 'f32[8,1]{1,0:T(8,128)}', space=vmem, size = 0x1000, scoped, tag = 'scratch operand']
  #allocation5 [shape = 'f32[8,1]{1,0:T(8,128)}', space=vmem, size = 0x1000, scoped, tag = 'scratch operand']
  %s0 = inlined_call_operand.hbm [shape: f32[2,4,4096], index: 0, kind: input, shape index: {}]
  %s1 = inlined_call_operand.vmem [shape: f32[8,4], index: 1, kind: input, shape index: {}]
  %s2 = inlined_call_operand.vmem [shape: f32[2,8,1], index: 2, kind: input, shape index: {}]
  %s3 = inlined_call_operand.hbm [shape: f32[2,8,4096], index: 3, kind: output, shape index: {}]
  %s4 = sld [smem:[#allocation0]]
  $region65: #{tpu_custom_call.1} parent=0
    _
  %s6 = ssub.s32 1, %s4
  %s7 = scalar_select 0, %s6, %s4
  $region1: #{tpu_custom_call.1} parent=0
    #allocation6 [shape = 'u8[131072]{0}', space=vmem, size = 0x20000, scoped, tag = 'input window, operand 0']
    #allocation7 [shape = 's32[2]{0}', space=sflag, size = 0x8, scoped, tag = 'scoped memory for tpu_custom_call.1']
    #allocation8 [shape = 's32[2]{0}', space=sflag, size = 0x8, scoped, tag = 'scoped memory for tpu_custom_call.1']
    #allocation9 [shape = 'u8[262144]{0}', space=vmem, size = 0x40000, scoped, tag = 'output window, operand 0']
    %8 = vsyncpa [#allocation7], 0
    %s9 = scalar_lea.sflag [#allocation7], 1
    %10 = vsyncpa %s9, 0
    %11 = vsyncpa [#allocation8], 0
    %s12 = scalar_lea.sflag [#allocation8], 1
    %13 = vsyncpa %s12, 0
    loop: start=0, step=1, limit=6
    $region2: #{tpu_custom_call.1} parent=1 // loop_pre_header
      _
    $region3: #{tpu_custom_call.1} parent=1 // loop_header
      %s15 = sphi 0, %s19
      %p16 = scmp.ge.s32.totalorder %s15, 6
      %s22 = sphi 0, %s41
      %s23 = sphi 0, %s37
      %s24 = sphi 0, %s33
      %s25 = sphi 0, %s22
      %s26 = sphi 0, %s23
      %s27 = sphi 0, %s24
      %s28 = sphi 0, %s25
      %s29 = sphi 0, %s26
      %s30 = sphi 0, %s27
      %s46 = sphi 0, %s48
      %s49 = sphi 0, %s46
      %s50 = sphi 0, %s49
      %s66 = sphi 0, %s50
      %s70 = sphi 0, %s70
      %s72 = sphi 0, %s70
      %s73 = sphi 0, %s72
      %s87 = sphi 0, %s73
      %s91 = sphi 0, %s91
      %s93 = sphi 0, %s91
      %s94 = sphi 0, %s93
      %s108 = sphi 0, %s94
      %s118 = sphi 0, %s120
      %s121 = sphi 0, %s118
      %s122 = sphi 0, %s121
      %s138 = sphi 0, %s122
    $region4: #{tpu_custom_call.1} parent=1 // loop_header_branch
      %18 = sbr.rel (%p16) target = $region8
    $region5: #{tpu_custom_call.1} parent=1 // loop_body
      %s20 = ssub.s32 %s15, 1
      %s21 = ssub.s32 %s15, 2
      %s31 = sadd.s32 1, %s24
      %p32 = scmp.ge.s32.totalorder %s31, 1
      %s33 = scalar_select %p32, 0, %s31
      %s34 = sadd.s32 1, %s23
      %s35 = scalar_select %p32, %s34, %s23
      %p36 = scmp.ge.s32.totalorder %s35, 2
      %s37 = scalar_select %p36, 0, %s35
      %s38 = sadd.s32 1, %s22
      %s39 = scalar_select %p36, %s38, %s22
      %p40 = scmp.ge.s32.totalorder %s39, 2
      %s41 = scalar_select %p40, 0, %s39
      %s42 = ssub.s32 %s22, %s41
      %s43 = ssub.s32 %s24, %s33
      %s44 = sor.u32 %s42, %s43
      %p45 = scmp.eq.s32.totalorder %s44, 0
      %s47 = sadd.s32 %s46, 1
      %s48 = scalar_select %p45, %s46, %s47
      %p51 = pneg %p45
      %p52 = scmp.eq.s32.totalorder %s15, 3
      %p53 = por %p51, %p52
      %p54 = scmp.ne.s32.totalorder %s46, %s49
      %p55 = scmp.eq.s32.totalorder %s15, 0
      %p56 = por %p54, %p55
      %p57 = scmp.ne.s32.totalorder %s46, %s49
      %p58 = scmp.eq.s32.totalorder %s20, 3
      %p59 = por %p57, %p58
      %p60 = scmp.ne.s32.totalorder %s49, %s50
      %p61 = scmp.eq.s32.totalorder %s20, 0
      %p62 = por %p60, %p61
      %p63 = scmp.ne.s32.totalorder %s49, %s50
      %p64 = scmp.eq.s32.totalorder %s21, 3
      %p65 = por %p63, %p64
      %p67 = scmp.ne.s32.totalorder %s50, %s66
      %p68 = scmp.eq.s32.totalorder %s21, 0
      %p69 = por %p67, %p68
      %s71 = sadd.s32 %s70, 1
      %p74 = scmp.eq.s32.totalorder %s15, 3
      %p75 = scmp.ne.s32.totalorder %s70, %s72
      %p76 = scmp.eq.s32.totalorder %s15, 0
      %p77 = por %p75, %p76
      %p78 = scmp.ne.s32.totalorder %s70, %s72
      %p79 = scmp.eq.s32.totalorder %s20, 3
      %p80 = por %p78, %p79
      %p81 = scmp.ne.s32.totalorder %s72, %s73
      %p82 = scmp.eq.s32.totalorder %s20, 0
      %p83 = por %p81, %p82
      %p84 = scmp.ne.s32.totalorder %s72, %s73
      %p85 = scmp.eq.s32.totalorder %s21, 3
      %p86 = por %p84, %p85
      %p88 = scmp.ne.s32.totalorder %s73, %s87
      %p89 = scmp.eq.s32.totalorder %s21, 0
      %p90 = por %p88, %p89
      %s92 = sadd.s32 %s91, 1
      %p95 = scmp.eq.s32.totalorder %s15, 3
      %p96 = scmp.ne.s32.totalorder %s91, %s93
      %p97 = scmp.eq.s32.totalorder %s15, 0
      %p98 = por %p96, %p97
      %p99 = scmp.ne.s32.totalorder %s91, %s93
      %p100 = scmp.eq.s32.totalorder %s20, 3
      %p101 = por %p99, %p100
      %p102 = scmp.ne.s32.totalorder %s93, %s94
      %p103 = scmp.eq.s32.totalorder %s20, 0
      %p104 = por %p102, %p103
      %p105 = scmp.ne.s32.totalorder %s93, %s94
      %p106 = scmp.eq.s32.totalorder %s21, 3
      %p107 = por %p105, %p106
      %p109 = scmp.ne.s32.totalorder %s94, %s108
      %p110 = scmp.eq.s32.totalorder %s21, 0
      %p111 = por %p109, %p110
      %s112 = smul.u32 %s24, %s23
      %s113 = smul.u32 %s33, %s37
      %s114 = ssub.s32 %s22, %s41
      %s115 = ssub.s32 %s112, %s113
      %s116 = sor.u32 %s114, %s115
      %p117 = scmp.eq.s32.totalorder %s116, 0
      %s119 = sadd.s32 %s118, 1
      %s120 = scalar_select %p117, %s118, %s119
      %p123 = pneg %p117
      %p124 = scmp.eq.s32.totalorder %s15, 3
      %p125 = por %p123, %p124
      %p126 = scmp.ne.s32.totalorder %s118, %s121
      %p127 = scmp.eq.s32.totalorder %s15, 0
      %p128 = por %p126, %p127
      %p129 = scmp.ne.s32.totalorder %s118, %s121
      %p130 = scmp.eq.s32.totalorder %s20, 3
      %p131 = por %p129, %p130
      %p132 = scmp.ne.s32.totalorder %s121, %s122
      %p133 = scmp.eq.s32.totalorder %s20, 0
      %p134 = por %p132, %p133
      %p135 = scmp.ne.s32.totalorder %s121, %s122
      %p136 = scmp.eq.s32.totalorder %s21, 3
      %p137 = por %p135, %p136
      %p139 = scmp.ne.s32.totalorder %s122, %s138
      %p140 = scmp.eq.s32.totalorder %s21, 0
      %p141 = por %p139, %p140
      %p142 = scmp.le.s32.totalorder 1, %s15
      %p143 = scmp.lt.s32.totalorder %s15, 5
      %p144 = pnand %p142, %p143
      %p145 = pneg %p144
      // Predicated region
      $region9: #{tpu_custom_call.1} parent=5 // pred_check
        _
      $region10: #{tpu_custom_call.1} parent=5 // pred_check_branch
        %147 = sbr.rel (%p144) target = $region12
      $region11: #{tpu_custom_call.1} parent=5 // pred_region
        %s148 = ssub.s32 %s15, 1
        // Predicated region
        $region13: #{tpu_custom_call.1} parent=11 // pred_check
          %p149 = pneg %p83
        $region14: #{tpu_custom_call.1} parent=11 // pred_check_branch
          %151 = sbr.rel (%p149) target = $region16
        $region15: #{tpu_custom_call.1} parent=11 // pred_region
          _
        $region16: #{tpu_custom_call.1} parent=11 // pred_fallthru
          _
        // Predicated region
        $region17: #{tpu_custom_call.1} parent=11 // pred_check
          %p152 = pneg %p104
        $region18: #{tpu_custom_call.1} parent=11 // pred_check_branch
          %154 = sbr.rel (%p152) target = $region20
        $region19: #{tpu_custom_call.1} parent=11 // pred_region
          _
        $region20: #{tpu_custom_call.1} parent=11 // pred_fallthru
          _
      $region12: #{tpu_custom_call.1} parent=5 // pred_fallthru
        _
      %p155 = scmp.lt.s32.totalorder %s15, 4
      // Predicated region
      $region21: #{tpu_custom_call.1} parent=5 // pred_check
        %p156 = pneg %p155
      $region22: #{tpu_custom_call.1} parent=5 // pred_check_branch
        %158 = sbr.rel (%p156) target = $region24
      $region23: #{tpu_custom_call.1} parent=5 // pred_region
        // Predicated region
        $region25: #{tpu_custom_call.1} parent=23 // pred_check
          %p159 = pneg %p56
        $region26: #{tpu_custom_call.1} parent=23 // pred_check_branch
          %161 = sbr.rel (%p159) target = $region28
        $region27: #{tpu_custom_call.1} parent=23 // pred_region
          %s162 = sand.u32 %s46, 1
          %s163 = scalar_lea.sflag [#allocation7], %s162
          %s164 = sand.u32 %s46, 1
          %s165 = smul.addr %s164, 128
          %s166 = scalar_lea.vmem [#allocation6], %s165
          %s167 = smul.u32 32, %s24
          %169 = vsyncadd %s163, 0
          %s170 = smul.addr %s22, 32
          %s171 = sadd.s32 %s167, %s170
          %s172 = smul.addr %s171, 4
          %s173 = scalar_lea.hbm %s0, %s172
          %s175 = sshll.u32 %s173, 4
          %s176 = int_to_ptr.hbm [resolvable:$true] %s175
          %s177 = sshll.u32 %s166, 4
          %s178 = int_to_ptr.vmem [resolvable:$true] %s177
          %180 = dma.hbm_to_vmem [thread:$0]  %s176, 2048, %s178, %s163
        $region28: #{tpu_custom_call.1} parent=23 // pred_fallthru
          _
      $region24: #{tpu_custom_call.1} parent=5 // pred_fallthru
        _
      %p181 = scmp.le.s32.totalorder 1, %s15
      %p182 = scmp.lt.s32.totalorder %s15, 5
      %p183 = pnand %p181, %p182
      %p184 = pneg %p183
      // Predicated region
      $region29: #{tpu_custom_call.1} parent=5 // pred_check
        _
      $region30: #{tpu_custom_call.1} parent=5 // pred_check_branch
        %186 = sbr.rel (%p183) target = $region32
      $region31: #{tpu_custom_call.1} parent=5 // pred_region
        %s187 = ssub.s32 %s15, 1
        %s188 = sand.u32 %s49, 1
        %s189 = scalar_lea.sflag [#allocation7], %s188
        %s190 = sand.u32 %s49, 1
        %s191 = smul.addr %s190, 128
        %s192 = scalar_lea.vmem [#allocation6], %s191
        // Predicated region
        $region33: #{tpu_custom_call.1} parent=31 // pred_check
          %p193 = pneg %p62
        $region34: #{tpu_custom_call.1} parent=31 // pred_check_branch
          %195 = sbr.rel (%p193) target = $region36
        $region35: #{tpu_custom_call.1} parent=31 // pred_region
          %197 = dma.done %s189, 2048
        $region36: #{tpu_custom_call.1} parent=31 // pred_fallthru
          _
        %s198 = sand.u32 %s49, 1
        %s199 = scalar_lea.sflag [#allocation7], %s198
        %s200 = sand.u32 %s49, 1
        %s201 = smul.addr %s200, 128
        %s202 = scalar_lea.vmem [#allocation6], %s201
        %p203 = pneg %p62
        %p204 = pneg %p59
        %p205 = pneg %p83
        %p206 = pneg %p80
        %p207 = pneg %p104
        %p208 = pneg %p101
        %p209 = pneg %p134
        %p210 = pneg %p131
        %s211 = sand.u32 %s121, 1
        %s212 = scalar_lea.sflag [#allocation8], %s211
        %s213 = sand.u32 %s121, 1
        %s214 = smul.addr %s213, 256
        %s215 = scalar_lea.vmem [#allocation9], %s214
        %s216 = smul.u32 32, %s27
        %s217 = smul.u32 %s27, %s26
        %s218 = smul.u32 32, %s217
        %s219 = smul.u32 %s27, 4096
        %v220 = vld [vmem:[%s1] sm:$0xff]
        %p221 = scmp.eq.s32.totalorder %s26, 0
        // Predicated region
        $region37: #{tpu_custom_call.1} parent=31 // pred_check
          %p222 = pneg %p221
        $region38: #{tpu_custom_call.1} parent=31 // pred_check_branch
          %224 = sbr.rel (%p222) target = $region40
        $region39: #{tpu_custom_call.1} parent=31 // pred_region
          %p225 = scmp.eq.s32.totalorder %s27, 0
          // Predicated region
          $region41: #{tpu_custom_call.1} parent=39 // pred_check
            %p226 = pneg %p225
          $region42: #{tpu_custom_call.1} parent=39 // pred_check_branch
            %228 = sbr.rel (%p226) target = $region44
          $region43: #{tpu_custom_call.1} parent=39 // pred_region
            %vm229 = vcmask 7168
            %230 = vst.msk [vmem:[#allocation2] sm:$0xff] %vm229, 0.0
            %231 = vst.msk [vmem:[#allocation3] sm:$0xff] %vm229, 0.0
          $region44: #{tpu_custom_call.1} parent=39 // pred_fallthru
            _
          %v232 = vld [vmem:[%s192] sm:$0xff]
          %v233 = vld [vmem:[%s192 + $0x8] sm:$0xff]
          %v234 = vld [vmem:[%s192 + $0x10] sm:$0xff]
          %v235 = vld [vmem:[%s192 + $0x18] sm:$0xff]
          %v236 = vld [vmem:[%s192 + $0x20] sm:$0xff]
          %v237 = vld [vmem:[%s192 + $0x28] sm:$0xff]
          %v238 = vld [vmem:[%s192 + $0x30] sm:$0xff]
          %v239 = vld [vmem:[%s192 + $0x38] sm:$0xff]
          %v240 = vld [vmem:[%s192 + $0x40] sm:$0xff]
          %v241 = vld [vmem:[%s192 + $0x48] sm:$0xff]
          %v242 = vld [vmem:[%s192 + $0x50] sm:$0xff]
          %v243 = vld [vmem:[%s192 + $0x58] sm:$0xff]
          %v244 = vld [vmem:[%s192 + $0x60] sm:$0xff]
          %v245 = vld [vmem:[%s192 + $0x68] sm:$0xff]
          %v246 = vld [vmem:[%s192 + $0x70] sm:$0xff]
          %v247 = vld [vmem:[%s192 + $0x78] sm:$0xff]
          %264 = vst [vmem:[#allocation1] ss:$2 sm:$0xff] %v232
          %s265 = scalar_lea.vmem [#allocation1], 16
          %266 = vst [vmem:[%s265] ss:$2 sm:$0xff] %v233
          %s267 = scalar_lea.vmem [#allocation1], 32
          %268 = vst [vmem:[%s267] ss:$2 sm:$0xff] %v234
          %s269 = scalar_lea.vmem [#allocation1], 48
          %270 = vst [vmem:[%s269] ss:$2 sm:$0xff] %v235
          %v271 = vld.sshfl [vmem:[#allocation1] sm:$0xff pattern:$0x75316420]
          %v272 = vld.sshfl [vmem:[#allocation1 + $0x8] sm:$0xff pattern:$0x75316420]
          %v273 = vld.sshfl [vmem:[#allocation1 + $0x10] sm:$0xff pattern:$0x75316420]
          %v274 = vld.sshfl [vmem:[#allocation1 + $0x18] sm:$0xff pattern:$0x75316420]
          %v275 = vld.sshfl [vmem:[#allocation1 + $0x20] sm:$0xff pattern:$0x75316420]
          %v276 = vld.sshfl [vmem:[#allocation1 + $0x28] sm:$0xff pattern:$0x75316420]
          %v277 = vld.sshfl [vmem:[#allocation1 + $0x30] sm:$0xff pattern:$0x75316420]
          %v278 = vld.sshfl [vmem:[#allocation1 + $0x38] sm:$0xff pattern:$0x75316420]
          %279 = vst [vmem:[#allocation1] ss:$2 sm:$0xff] %v236
          %280 = vst [vmem:[%s265] ss:$2 sm:$0xff] %v237
          %281 = vst [vmem:[%s267] ss:$2 sm:$0xff] %v238
          %282 = vst [vmem:[%s269] ss:$2 sm:$0xff] %v239
          %v283 = vld.sshfl [vmem:[#allocation1] sm:$0xff pattern:$0x75316420]
          %v284 = vld.sshfl [vmem:[#allocation1 + $0x8] sm:$0xff pattern:$0x75316420]
          %v285 = vld.sshfl [vmem:[#allocation1 + $0x10] sm:$0xff pattern:$0x75316420]
          %v286 = vld.sshfl [vmem:[#allocation1 + $0x18] sm:$0xff pattern:$0x75316420]
          %v287 = vld.sshfl [vmem:[#allocation1 + $0x20] sm:$0xff pattern:$0x75316420]
          %v288 = vld.sshfl [vmem:[#allocation1 + $0x28] sm:$0xff pattern:$0x75316420]
          %v289 = vld.sshfl [vmem:[#allocation1 + $0x30] sm:$0xff pattern:$0x75316420]
          %v290 = vld.sshfl [vmem:[#allocation1 + $0x38] sm:$0xff pattern:$0x75316420]
          %291 = vst [vmem:[#allocation1] ss:$2 sm:$0xff] %v240
          %292 = vst [vmem:[%s265] ss:$2 sm:$0xff] %v241
          %293 = vst [vmem:[%s267] ss:$2 sm:$0xff] %v242
          %294 = vst [vmem:[%s269] ss:$2 sm:$0xff] %v243
          %v295 = vld.sshfl [vmem:[#allocation1] sm:$0xff pattern:$0x75316420]
          %v296 = vld.sshfl [vmem:[#allocation1 + $0x8] sm:$0xff pattern:$0x75316420]
          %v297 = vld.sshfl [vmem:[#allocation1 + $0x10] sm:$0xff pattern:$0x75316420]
          %v298 = vld.sshfl [vmem:[#allocation1 + $0x18] sm:$0xff pattern:$0x75316420]
          %v299 = vld.sshfl [vmem:[#allocation1 + $0x20] sm:$0xff pattern:$0x75316420]
          %v300 = vld.sshfl [vmem:[#allocation1 + $0x28] sm:$0xff pattern:$0x75316420]
          %v301 = vld.sshfl [vmem:[#allocation1 + $0x30] sm:$0xff pattern:$0x75316420]
          %v302 = vld.sshfl [vmem:[#allocation1 + $0x38] sm:$0xff pattern:$0x75316420]
          %303 = vst [vmem:[#allocation1] ss:$2 sm:$0xff] %v244
          %304 = vst [vmem:[%s265] ss:$2 sm:$0xff] %v245
          %305 = vst [vmem:[%s267] ss:$2 sm:$0xff] %v246
          %306 = vst [vmem:[%s269] ss:$2 sm:$0xff] %v247
          %v307 = vld.sshfl [vmem:[#allocation1] sm:$0xff pattern:$0x75316420]
          %v308 = vld.sshfl [vmem:[#allocation1 + $0x8] sm:$0xff pattern:$0x75316420]
          %v309 = vld.sshfl [vmem:[#allocation1 + $0x10] sm:$0xff pattern:$0x75316420]
          %v310 = vld.sshfl [vmem:[#allocation1 + $0x18] sm:$0xff pattern:$0x75316420]
          %v311 = vld.sshfl [vmem:[#allocation1 + $0x20] sm:$0xff pattern:$0x75316420]
          %v312 = vld.sshfl [vmem:[#allocation1 + $0x28] sm:$0xff pattern:$0x75316420]
          %v313 = vld.sshfl [vmem:[#allocation1 + $0x30] sm:$0xff pattern:$0x75316420]
          %v314 = vld.sshfl [vmem:[#allocation1 + $0x38] sm:$0xff pattern:$0x75316420]
          %vm315 = vcmask 31744
          %v317 = vsel %vm315, %v220, 0
          %vm319 = vcmask 1043456
          %v320 = vsel %vm319, %v271, 0
          %v322 = vsel %vm319, %v272, 0
          %v324 = vsel %vm319, %v273, 0
          %v326 = vsel %vm319, %v274, 0
          %v328 = vsel %vm319, %v275, 0
          %v330 = vsel %vm319, %v276, 0
          %v332 = vsel %vm319, %v277, 0
          %v334 = vsel %vm319, %v278, 0
          %v336 = vsel %vm319, %v283, 0
          %v338 = vsel %vm319, %v284, 0
          %v340 = vsel %vm319, %v285, 0
          %v342 = vsel %vm319, %v286, 0
          %v344 = vsel %vm319, %v287, 0
          %v346 = vsel %vm319, %v288, 0
          %v348 = vsel %vm319, %v289, 0
          %v350 = vsel %vm319, %v290, 0
          %v352 = vsel %vm319, %v295, 0
          %v354 = vsel %vm319, %v296, 0
          %v356 = vsel %vm319, %v297, 0
          %v358 = vsel %vm319, %v298, 0
          %v360 = vsel %vm319, %v299, 0
          %v362 = vsel %vm319, %v300, 0
          %v364 = vsel %vm319, %v301, 0
          %v366 = vsel %vm319, %v302, 0
          %v368 = vsel %vm319, %v307, 0
          %v370 = vsel %vm319, %v308, 0
          %v372 = vsel %vm319, %v309, 0
          %v374 = vsel %vm319, %v310, 0
          %v376 = vsel %vm319, %v311, 0
          %v378 = vsel %vm319, %v312, 0
          %v380 = vsel %vm319, %v313, 0
          %v382 = vsel %vm319, %v314, 0
          %384 = vmatpush.msra.mxu0 0.0
          %385 = vmatpush.msra.mxu0 0.0
          %386 = vmatpush.msra.mxu0 0.0
          %387 = vmatpush.msra.mxu0 0.0
          %388 = vmatpush.msra.mxu0 0.0
          %389 = vmatpush.msra.mxu0 0.0
          %390 = vmatpush.msra.mxu0 0.0
          %391 = vmatpush.msra.mxu0 0.0
          %392 = vmatpush.msra.mxu0 0.0
          %393 = vmatpush.msra.mxu0 0.0
          %394 = vmatpush.msra.mxu0 0.0
          %395 = vmatpush.msra.mxu0 0.0
          %396 = vmatpush.msra.mxu0 0.0
          %397 = vmatpush.msra.mxu0 0.0
          %398 = vmatpush.msra.mxu0 0.0
          %399 = vmatpush.msra.mxu0 %v320
          %400 = vmatmul.f32.gmra.mxu0 %v317
          %v401 = vpop.f32.mrf.mxu0
          %v402 = vadd.f32 0.0, %v401
          %403 = vdwg.mxu0
          %404 = vmatpush.msra.mxu0 0.0
          %405 = vmatpush.msra.mxu0 0.0
          %406 = vmatpush.msra.mxu0 0.0
          %407 = vmatpush.msra.mxu0 0.0
          %408 = vmatpush.msra.mxu0 0.0
          %409 = vmatpush.msra.mxu0 0.0
          %410 = vmatpush.msra.mxu0 0.0
          %411 = vmatpush.msra.mxu0 0.0
          %412 = vmatpush.msra.mxu0 0.0
          %413 = vmatpush.msra.mxu0 0.0
          %414 = vmatpush.msra.mxu0 0.0
          %415 = vmatpush.msra.mxu0 0.0
          %416 = vmatpush.msra.mxu0 0.0
          %417 = vmatpush.msra.mxu0 0.0
          %418 = vmatpush.msra.mxu0 0.0
          %419 = vmatpush.msra.mxu0 %v322
          %420 = vmatmul.f32.gmra.mxu0 %v317
          %v421 = vpop.f32.mrf.mxu0
          %v422 = vadd.f32 0.0, %v421
          %423 = vdwg.mxu0
          %424 = vmatpush.msra.mxu0 0.0
          %425 = vmatpush.msra.mxu0 0.0
          %426 = vmatpush.msra.mxu0 0.0
          %427 = vmatpush.msra.mxu0 0.0
          %428 = vmatpush.msra.mxu0 0.0
          %429 = vmatpush.msra.mxu0 0.0
          %430 = vmatpush.msra.mxu0 0.0
          %431 = vmatpush.msra.mxu0 0.0
          %432 = vmatpush.msra.mxu0 0.0
          %433 = vmatpush.msra.mxu0 0.0
          %434 = vmatpush.msra.mxu0 0.0
          %435 = vmatpush.msra.mxu0 0.0
          %436 = vmatpush.msra.mxu0 0.0
          %437 = vmatpush.msra.mxu0 0.0
          %438 = vmatpush.msra.mxu0 0.0
          %439 = vmatpush.msra.mxu0 %v324
          %440 = vmatmul.f32.gmra.mxu0 %v317
          %v441 = vpop.f32.mrf.mxu0
          %v442 = vadd.f32 0.0, %v441
          %443 = vdwg.mxu0
          %444 = vmatpush.msra.mxu0 0.0
          %445 = vmatpush.msra.mxu0 0.0
          %446 = vmatpush.msra.mxu0 0.0
          %447 = vmatpush.msra.mxu0 0.0
          %448 = vmatpush.msra.mxu0 0.0
          %449 = vmatpush.msra.mxu0 0.0
          %450 = vmatpush.msra.mxu0 0.0
          %451 = vmatpush.msra.mxu0 0.0
          %452 = vmatpush.msra.mxu0 0.0
          %453 = vmatpush.msra.mxu0 0.0
          %454 = vmatpush.msra.mxu0 0.0
          %455 = vmatpush.msra.mxu0 0.0
          %456 = vmatpush.msra.mxu0 0.0
          %457 = vmatpush.msra.mxu0 0.0
          %458 = vmatpush.msra.mxu0 0.0
          %459 = vmatpush.msra.mxu0 %v326
          %460 = vmatmul.f32.gmra.mxu0 %v317
          %v461 = vpop.f32.mrf.mxu0
          %v462 = vadd.f32 0.0, %v461
          %463 = vdwg.mxu0
          %464 = vmatpush.msra.mxu0 0.0
          %465 = vmatpush.msra.mxu0 0.0
          %466 = vmatpush.msra.mxu0 0.0
          %467 = vmatpush.msra.mxu0 0.0
          %468 = vmatpush.msra.mxu0 0.0
          %469 = vmatpush.msra.mxu0 0.0
          %470 = vmatpush.msra.mxu0 0.0
          %471 = vmatpush.msra.mxu0 0.0
          %472 = vmatpush.msra.mxu0 0.0
          %473 = vmatpush.msra.mxu0 0.0
          %474 = vmatpush.msra.mxu0 0.0
          %475 = vmatpush.msra.mxu0 0.0
          %476 = vmatpush.msra.mxu0 0.0
          %477 = vmatpush.msra.mxu0 0.0
          %478 = vmatpush.msra.mxu0 0.0
          %479 = vmatpush.msra.mxu0 %v328
          %480 = vmatmul.f32.gmra.mxu0 %v317
          %v481 = vpop.f32.mrf.mxu0
          %v482 = vadd.f32 0.0, %v481
          %483 = vdwg.mxu0
          %484 = vmatpush.msra.mxu0 0.0
          %485 = vmatpush.msra.mxu0 0.0
          %486 = vmatpush.msra.mxu0 0.0
          %487 = vmatpush.msra.mxu0 0.0
          %488 = vmatpush.msra.mxu0 0.0
          %489 = vmatpush.msra.mxu0 0.0
          %490 = vmatpush.msra.mxu0 0.0
          %491 = vmatpush.msra.mxu0 0.0
          %492 = vmatpush.msra.mxu0 0.0
          %493 = vmatpush.msra.mxu0 0.0
          %494 = vmatpush.msra.mxu0 0.0
          %495 = vmatpush.msra.mxu0 0.0
          %496 = vmatpush.msra.mxu0 0.0
          %497 = vmatpush.msra.mxu0 0.0
          %498 = vmatpush.msra.mxu0 0.0
          %499 = vmatpush.msra.mxu0 %v330
          %500 = vmatmul.f32.gmra.mxu0 %v317
          %v501 = vpop.f32.mrf.mxu0
          %v502 = vadd.f32 0.0, %v501
          %503 = vdwg.mxu0
          %504 = vmatpush.msra.mxu0 0.0
          %505 = vmatpush.msra.mxu0 0.0
          %506 = vmatpush.msra.mxu0 0.0
          %507 = vmatpush.msra.mxu0 0.0
          %508 = vmatpush.msra.mxu0 0.0
          %509 = vmatpush.msra.mxu0 0.0
          %510 = vmatpush.msra.mxu0 0.0
          %511 = vmatpush.msra.mxu0 0.0
          %512 = vmatpush.msra.mxu0 0.0
          %513 = vmatpush.msra.mxu0 0.0
          %514 = vmatpush.msra.mxu0 0.0
          %515 = vmatpush.msra.mxu0 0.0
          %516 = vmatpush.msra.mxu0 0.0
          %517 = vmatpush.msra.mxu0 0.0
          %518 = vmatpush.msra.mxu0 0.0
          %519 = vmatpush.msra.mxu0 %v332
          %520 = vmatmul.f32.gmra.mxu0 %v317
          %v521 = vpop.f32.mrf.mxu0
          %v522 = vadd.f32 0.0, %v521
          %523 = vdwg.mxu0
          %524 = vmatpush.msra.mxu0 0.0
          %525 = vmatpush.msra.mxu0 0.0
          %526 = vmatpush.msra.mxu0 0.0
          %527 = vmatpush.msra.mxu0 0.0
          %528 = vmatpush.msra.mxu0 0.0
          %529 = vmatpush.msra.mxu0 0.0
          %530 = vmatpush.msra.mxu0 0.0
          %531 = vmatpush.msra.mxu0 0.0
          %532 = vmatpush.msra.mxu0 0.0
          %533 = vmatpush.msra.mxu0 0.0
          %534 = vmatpush.msra.mxu0 0.0
          %535 = vmatpush.msra.mxu0 0.0
          %536 = vmatpush.msra.mxu0 0.0
          %537 = vmatpush.msra.mxu0 0.0
          %538 = vmatpush.msra.mxu0 0.0
          %539 = vmatpush.msra.mxu0 %v334
          %540 = vmatmul.f32.gmra.mxu0 %v317
          %v541 = vpop.f32.mrf.mxu0
          %v542 = vadd.f32 0.0, %v541
          %543 = vdwg.mxu0
          %544 = vmatpush.msra.mxu0 0.0
          %545 = vmatpush.msra.mxu0 0.0
          %546 = vmatpush.msra.mxu0 0.0
          %547 = vmatpush.msra.mxu0 0.0
          %548 = vmatpush.msra.mxu0 0.0
          %549 = vmatpush.msra.mxu0 0.0
          %550 = vmatpush.msra.mxu0 0.0
          %551 = vmatpush.msra.mxu0 0.0
          %552 = vmatpush.msra.mxu0 0.0
          %553 = vmatpush.msra.mxu0 0.0
          %554 = vmatpush.msra.mxu0 0.0
          %555 = vmatpush.msra.mxu0 0.0
          %556 = vmatpush.msra.mxu0 0.0
          %557 = vmatpush.msra.mxu0 0.0
          %558 = vmatpush.msra.mxu0 0.0
          %559 = vmatpush.msra.mxu0 %v336
          %560 = vmatmul.f32.gmra.mxu0 %v317
          %v561 = vpop.f32.mrf.mxu0
          %v562 = vadd.f32 0.0, %v561
          %563 = vdwg.mxu0
          %564 = vmatpush.msra.mxu0 0.0
          %565 = vmatpush.msra.mxu0 0.0
          %566 = vmatpush.msra.mxu0 0.0
          %567 = vmatpush.msra.mxu0 0.0
          %568 = vmatpush.msra.mxu0 0.0
          %569 = vmatpush.msra.mxu0 0.0
          %570 = vmatpush.msra.mxu0 0.0
          %571 = vmatpush.msra.mxu0 0.0
          %572 = vmatpush.msra.mxu0 0.0
          %573 = vmatpush.msra.mxu0 0.0
          %574 = vmatpush.msra.mxu0 0.0
          %575 = vmatpush.msra.mxu0 0.0
          %576 = vmatpush.msra.mxu0 0.0
          %577 = vmatpush.msra.mxu0 0.0
          %578 = vmatpush.msra.mxu0 0.0
          %579 = vmatpush.msra.mxu0 %v338
          %580 = vmatmul.f32.gmra.mxu0 %v317
          %v581 = vpop.f32.mrf.mxu0
          %v582 = vadd.f32 0.0, %v581
          %583 = vdwg.mxu0
          %584 = vmatpush.msra.mxu0 0.0
          %585 = vmatpush.msra.mxu0 0.0
          %586 = vmatpush.msra.mxu0 0.0
          %587 = vmatpush.msra.mxu0 0.0
          %588 = vmatpush.msra.mxu0 0.0
          %589 = vmatpush.msra.mxu0 0.0
          %590 = vmatpush.msra.mxu0 0.0
          %591 = vmatpush.msra.mxu0 0.0
          %592 = vmatpush.msra.mxu0 0.0
          %593 = vmatpush.msra.mxu0 0.0
          %594 = vmatpush.msra.mxu0 0.0
          %595 = vmatpush.msra.mxu0 0.0
          %596 = vmatpush.msra.mxu0 0.0
          %597 = vmatpush.msra.mxu0 0.0
          %598 = vmatpush.msra.mxu0 0.0
          %599 = vmatpush.msra.mxu0 %v340
          %600 = vmatmul.f32.gmra.mxu0 %v317
          %v601 = vpop.f32.mrf.mxu0
          %v602 = vadd.f32 0.0, %v601
          %603 = vdwg.mxu0
          %604 = vmatpush.msra.mxu0 0.0
          %605 = vmatpush.msra.mxu0 0.0
          %606 = vmatpush.msra.mxu0 0.0
          %607 = vmatpush.msra.mxu0 0.0
          %608 = vmatpush.msra.mxu0 0.0
          %609 = vmatpush.msra.mxu0 0.0
          %610 = vmatpush.msra.mxu0 0.0
          %611 = vmatpush.msra.mxu0 0.0
          %612 = vmatpush.msra.mxu0 0.0
          %613 = vmatpush.msra.mxu0 0.0
          %614 = vmatpush.msra.mxu0 0.0
          %615 = vmatpush.msra.mxu0 0.0
          %616 = vmatpush.msra.mxu0 0.0
          %617 = vmatpush.msra.mxu0 0.0
          %618 = vmatpush.msra.mxu0 0.0
          %619 = vmatpush.msra.mxu0 %v342
          %620 = vmatmul.f32.gmra.mxu0 %v317
          %v621 = vpop.f32.mrf.mxu0
          %v622 = vadd.f32 0.0, %v621
          %623 = vdwg.mxu0
          %624 = vmatpush.msra.mxu0 0.0
          %625 = vmatpush.msra.mxu0 0.0
          %626 = vmatpush.msra.mxu0 0.0
          %627 = vmatpush.msra.mxu0 0.0
          %628 = vmatpush.msra.mxu0 0.0
          %629 = vmatpush.msra.mxu0 0.0
          %630 = vmatpush.msra.mxu0 0.0
          %631 = vmatpush.msra.mxu0 0.0
          %632 = vmatpush.msra.mxu0 0.0
          %633 = vmatpush.msra.mxu0 0.0
          %634 = vmatpush.msra.mxu0 0.0
          %635 = vmatpush.msra.mxu0 0.0
          %636 = vmatpush.msra.mxu0 0.0
          %637 = vmatpush.msra.mxu0 0.0
          %638 = vmatpush.msra.mxu0 0.0
          %639 = vmatpush.msra.mxu0 %v344
          %640 = vmatmul.f32.gmra.mxu0 %v317
          %v641 = vpop.f32.mrf.mxu0
          %v642 = vadd.f32 0.0, %v641
          %643 = vdwg.mxu0
          %644 = vmatpush.msra.mxu0 0.0
          %645 = vmatpush.msra.mxu0 0.0
          %646 = vmatpush.msra.mxu0 0.0
          %647 = vmatpush.msra.mxu0 0.0
          %648 = vmatpush.msra.mxu0 0.0
          %649 = vmatpush.msra.mxu0 0.0
          %650 = vmatpush.msra.mxu0 0.0
          %651 = vmatpush.msra.mxu0 0.0
          %652 = vmatpush.msra.mxu0 0.0
          %653 = vmatpush.msra.mxu0 0.0
          %654 = vmatpush.msra.mxu0 0.0
          %655 = vmatpush.msra.mxu0 0.0
          %656 = vmatpush.msra.mxu0 0.0
          %657 = vmatpush.msra.mxu0 0.0
          %658 = vmatpush.msra.mxu0 0.0
          %659 = vmatpush.msra.mxu0 %v346
          %660 = vmatmul.f32.gmra.mxu0 %v317
          %v661 = vpop.f32.mrf.mxu0
          %v662 = vadd.f32 0.0, %v661
          %663 = vdwg.mxu0
          %664 = vmatpush.msra.mxu0 0.0
          %665 = vmatpush.msra.mxu0 0.0
          %666 = vmatpush.msra.mxu0 0.0
          %667 = vmatpush.msra.mxu0 0.0
          %668 = vmatpush.msra.mxu0 0.0
          %669 = vmatpush.msra.mxu0 0.0
          %670 = vmatpush.msra.mxu0 0.0
          %671 = vmatpush.msra.mxu0 0.0
          %672 = vmatpush.msra.mxu0 0.0
          %673 = vmatpush.msra.mxu0 0.0
          %674 = vmatpush.msra.mxu0 0.0
          %675 = vmatpush.msra.mxu0 0.0
          %676 = vmatpush.msra.mxu0 0.0
          %677 = vmatpush.msra.mxu0 0.0
          %678 = vmatpush.msra.mxu0 0.0
          %679 = vmatpush.msra.mxu0 %v348
          %680 = vmatmul.f32.gmra.mxu0 %v317
          %v681 = vpop.f32.mrf.mxu0
          %v682 = vadd.f32 0.0, %v681
          %683 = vdwg.mxu0
          %684 = vmatpush.msra.mxu0 0.0
          %685 = vmatpush.msra.mxu0 0.0
          %686 = vmatpush.msra.mxu0 0.0
          %687 = vmatpush.msra.mxu0 0.0
          %688 = vmatpush.msra.mxu0 0.0
          %689 = vmatpush.msra.mxu0 0.0
          %690 = vmatpush.msra.mxu0 0.0
          %691 = vmatpush.msra.mxu0 0.0
          %692 = vmatpush.msra.mxu0 0.0
          %693 = vmatpush.msra.mxu0 0.0
          %694 = vmatpush.msra.mxu0 0.0
          %695 = vmatpush.msra.mxu0 0.0
          %696 = vmatpush.msra.mxu0 0.0
          %697 = vmatpush.msra.mxu0 0.0
          %698 = vmatpush.msra.mxu0 0.0
          %699 = vmatpush.msra.mxu0 %v350
          %700 = vmatmul.f32.gmra.mxu0 %v317
          %v701 = vpop.f32.mrf.mxu0
          %v702 = vadd.f32 0.0, %v701
          %703 = vdwg.mxu0
          %704 = vmatpush.msra.mxu0 0.0
          %705 = vmatpush.msra.mxu0 0.0
          %706 = vmatpush.msra.mxu0 0.0
          %707 = vmatpush.msra.mxu0 0.0
          %708 = vmatpush.msra.mxu0 0.0
          %709 = vmatpush.msra.mxu0 0.0
          %710 = vmatpush.msra.mxu0 0.0
          %711 = vmatpush.msra.mxu0 0.0
          %712 = vmatpush.msra.mxu0 0.0
          %713 = vmatpush.msra.mxu0 0.0
          %714 = vmatpush.msra.mxu0 0.0
          %715 = vmatpush.msra.mxu0 0.0
          %716 = vmatpush.msra.mxu0 0.0
          %717 = vmatpush.msra.mxu0 0.0
          %718 = vmatpush.msra.mxu0 0.0
          %719 = vmatpush.msra.mxu0 %v352
          %720 = vmatmul.f32.gmra.mxu0 %v317
          %v721 = vpop.f32.mrf.mxu0
          %v722 = vadd.f32 0.0, %v721
          %723 = vdwg.mxu0
          %724 = vmatpush.msra.mxu0 0.0
          %725 = vmatpush.msra.mxu0 0.0
          %726 = vmatpush.msra.mxu0 0.0
          %727 = vmatpush.msra.mxu0 0.0
          %728 = vmatpush.msra.mxu0 0.0
          %729 = vmatpush.msra.mxu0 0.0
          %730 = vmatpush.msra.mxu0 0.0
          %731 = vmatpush.msra.mxu0 0.0
          %732 = vmatpush.msra.mxu0 0.0
          %733 = vmatpush.msra.mxu0 0.0
          %734 = vmatpush.msra.mxu0 0.0
          %735 = vmatpush.msra.mxu0 0.0
          %736 = vmatpush.msra.mxu0 0.0
          %737 = vmatpush.msra.mxu0 0.0
          %738 = vmatpush.msra.mxu0 0.0
          %739 = vmatpush.msra.mxu0 %v354
          %740 = vmatmul.f32.gmra.mxu0 %v317
          %v741 = vpop.f32.mrf.mxu0
          %v742 = vadd.f32 0.0, %v741
          %743 = vdwg.mxu0
          %744 = vmatpush.msra.mxu0 0.0
          %745 = vmatpush.msra.mxu0 0.0
          %746 = vmatpush.msra.mxu0 0.0
          %747 = vmatpush.msra.mxu0 0.0
          %748 = vmatpush.msra.mxu0 0.0
          %749 = vmatpush.msra.mxu0 0.0
          %750 = vmatpush.msra.mxu0 0.0
          %751 = vmatpush.msra.mxu0 0.0
          %752 = vmatpush.msra.mxu0 0.0
          %753 = vmatpush.msra.mxu0 0.0
          %754 = vmatpush.msra.mxu0 0.0
          %755 = vmatpush.msra.mxu0 0.0
          %756 = vmatpush.msra.mxu0 0.0
          %757 = vmatpush.msra.mxu0 0.0
          %758 = vmatpush.msra.mxu0 0.0
          %759 = vmatpush.msra.mxu0 %v356
          %760 = vmatmul.f32.gmra.mxu0 %v317
          %v761 = vpop.f32.mrf.mxu0
          %v762 = vadd.f32 0.0, %v761
          %763 = vdwg.mxu0
          %764 = vmatpush.msra.mxu0 0.0
          %765 = vmatpush.msra.mxu0 0.0
          %766 = vmatpush.msra.mxu0 0.0
          %767 = vmatpush.msra.mxu0 0.0
          %768 = vmatpush.msra.mxu0 0.0
          %769 = vmatpush.msra.mxu0 0.0
          %770 = vmatpush.msra.mxu0 0.0
          %771 = vmatpush.msra.mxu0 0.0
          %772 = vmatpush.msra.mxu0 0.0
          %773 = vmatpush.msra.mxu0 0.0
          %774 = vmatpush.msra.mxu0 0.0
          %775 = vmatpush.msra.mxu0 0.0
          %776 = vmatpush.msra.mxu0 0.0
          %777 = vmatpush.msra.mxu0 0.0
          %778 = vmatpush.msra.mxu0 0.0
          %779 = vmatpush.msra.mxu0 %v358
          %780 = vmatmul.f32.gmra.mxu0 %v317
          %v781 = vpop.f32.mrf.mxu0
          %v782 = vadd.f32 0.0, %v781
          %783 = vdwg.mxu0
          %784 = vmatpush.msra.mxu0 0.0
          %785 = vmatpush.msra.mxu0 0.0
          %786 = vmatpush.msra.mxu0 0.0
          %787 = vmatpush.msra.mxu0 0.0
          %788 = vmatpush.msra.mxu0 0.0
          %789 = vmatpush.msra.mxu0 0.0
          %790 = vmatpush.msra.mxu0 0.0
          %791 = vmatpush.msra.mxu0 0.0
          %792 = vmatpush.msra.mxu0 0.0
          %793 = vmatpush.msra.mxu0 0.0
          %794 = vmatpush.msra.mxu0 0.0
          %795 = vmatpush.msra.mxu0 0.0
          %796 = vmatpush.msra.mxu0 0.0
          %797 = vmatpush.msra.mxu0 0.0
          %798 = vmatpush.msra.mxu0 0.0
          %799 = vmatpush.msra.mxu0 %v360
          %800 = vmatmul.f32.gmra.mxu0 %v317
          %v801 = vpop.f32.mrf.mxu0
          %v802 = vadd.f32 0.0, %v801
          %803 = vdwg.mxu0
          %804 = vmatpush.msra.mxu0 0.0
          %805 = vmatpush.msra.mxu0 0.0
          %806 = vmatpush.msra.mxu0 0.0
          %807 = vmatpush.msra.mxu0 0.0
          %808 = vmatpush.msra.mxu0 0.0
          %809 = vmatpush.msra.mxu0 0.0
          %810 = vmatpush.msra.mxu0 0.0
          %811 = vmatpush.msra.mxu0 0.0
          %812 = vmatpush.msra.mxu0 0.0
          %813 = vmatpush.msra.mxu0 0.0
          %814 = vmatpush.msra.mxu0 0.0
          %815 = vmatpush.msra.mxu0 0.0
          %816 = vmatpush.msra.mxu0 0.0
          %817 = vmatpush.msra.mxu0 0.0
          %818 = vmatpush.msra.mxu0 0.0
          %819 = vmatpush.msra.mxu0 %v362
          %820 = vmatmul.f32.gmra.mxu0 %v317
          %v821 = vpop.f32.mrf.mxu0
          %v822 = vadd.f32 0.0, %v821
          %823 = vdwg.mxu0
          %824 = vmatpush.msra.mxu0 0.0
          %825 = vmatpush.msra.mxu0 0.0
          %826 = vmatpush.msra.mxu0 0.0
          %827 = vmatpush.msra.mxu0 0.0
          %828 = vmatpush.msra.mxu0 0.0
          %829 = vmatpush.msra.mxu0 0.0
          %830 = vmatpush.msra.mxu0 0.0
          %831 = vmatpush.msra.mxu0 0.0
          %832 = vmatpush.msra.mxu0 0.0
          %833 = vmatpush.msra.mxu0 0.0
          %834 = vmatpush.msra.mxu0 0.0
          %835 = vmatpush.msra.mxu0 0.0
          %836 = vmatpush.msra.mxu0 0.0
          %837 = vmatpush.msra.mxu0 0.0
          %838 = vmatpush.msra.mxu0 0.0
          %839 = vmatpush.msra.mxu0 %v364
          %840 = vmatmul.f32.gmra.mxu0 %v317
          %v841 = vpop.f32.mrf.mxu0
          %v842 = vadd.f32 0.0, %v841
          %843 = vdwg.mxu0
          %844 = vmatpush.msra.mxu0 0.0
          %845 = vmatpush.msra.mxu0 0.0
          %846 = vmatpush.msra.mxu0 0.0
          %847 = vmatpush.msra.mxu0 0.0
          %848 = vmatpush.msra.mxu0 0.0
          %849 = vmatpush.msra.mxu0 0.0
          %850 = vmatpush.msra.mxu0 0.0
          %851 = vmatpush.msra.mxu0 0.0
          %852 = vmatpush.msra.mxu0 0.0
          %853 = vmatpush.msra.mxu0 0.0
          %854 = vmatpush.msra.mxu0 0.0
          %855 = vmatpush.msra.mxu0 0.0
          %856 = vmatpush.msra.mxu0 0.0
          %857 = vmatpush.msra.mxu0 0.0
          %858 = vmatpush.msra.mxu0 0.0
          %859 = vmatpush.msra.mxu0 %v366
          %860 = vmatmul.f32.gmra.mxu0 %v317
          %v861 = vpop.f32.mrf.mxu0
          %v862 = vadd.f32 0.0, %v861
          %863 = vdwg.mxu0
          %864 = vmatpush.msra.mxu0 0.0
          %865 = vmatpush.msra.mxu0 0.0
          %866 = vmatpush.msra.mxu0 0.0
          %867 = vmatpush.msra.mxu0 0.0
          %868 = vmatpush.msra.mxu0 0.0
          %869 = vmatpush.msra.mxu0 0.0
          %870 = vmatpush.msra.mxu0 0.0
          %871 = vmatpush.msra.mxu0 0.0
          %872 = vmatpush.msra.mxu0 0.0
          %873 = vmatpush.msra.mxu0 0.0
          %874 = vmatpush.msra.mxu0 0.0
          %875 = vmatpush.msra.mxu0 0.0
          %876 = vmatpush.msra.mxu0 0.0
          %877 = vmatpush.msra.mxu0 0.0
          %878 = vmatpush.msra.mxu0 0.0
          %879 = vmatpush.msra.mxu0 %v368
          %880 = vmatmul.f32.gmra.mxu0 %v317
          %v881 = vpop.f32.mrf.mxu0
          %v882 = vadd.f32 0.0, %v881
          %883 = vdwg.mxu0
          %884 = vmatpush.msra.mxu0 0.0
          %885 = vmatpush.msra.mxu0 0.0
          %886 = vmatpush.msra.mxu0 0.0
          %887 = vmatpush.msra.mxu0 0.0
          %888 = vmatpush.msra.mxu0 0.0
          %889 = vmatpush.msra.mxu0 0.0
          %890 = vmatpush.msra.mxu0 0.0
          %891 = vmatpush.msra.mxu0 0.0
          %892 = vmatpush.msra.mxu0 0.0
          %893 = vmatpush.msra.mxu0 0.0
          %894 = vmatpush.msra.mxu0 0.0
          %895 = vmatpush.msra.mxu0 0.0
          %896 = vmatpush.msra.mxu0 0.0
          %897 = vmatpush.msra.mxu0 0.0
          %898 = vmatpush.msra.mxu0 0.0
          %899 = vmatpush.msra.mxu0 %v370
          %900 = vmatmul.f32.gmra.mxu0 %v317
          %v901 = vpop.f32.mrf.mxu0
          %v902 = vadd.f32 0.0, %v901
          %903 = vdwg.mxu0
          %904 = vmatpush.msra.mxu0 0.0
          %905 = vmatpush.msra.mxu0 0.0
          %906 = vmatpush.msra.mxu0 0.0
          %907 = vmatpush.msra.mxu0 0.0
          %908 = vmatpush.msra.mxu0 0.0
          %909 = vmatpush.msra.mxu0 0.0
          %910 = vmatpush.msra.mxu0 0.0
          %911 = vmatpush.msra.mxu0 0.0
          %912 = vmatpush.msra.mxu0 0.0
          %913 = vmatpush.msra.mxu0 0.0
          %914 = vmatpush.msra.mxu0 0.0
          %915 = vmatpush.msra.mxu0 0.0
          %916 = vmatpush.msra.mxu0 0.0
          %917 = vmatpush.msra.mxu0 0.0
          %918 = vmatpush.msra.mxu0 0.0
          %919 = vmatpush.msra.mxu0 %v372
          %920 = vmatmul.f32.gmra.mxu0 %v317
          %v921 = vpop.f32.mrf.mxu0
          %v922 = vadd.f32 0.0, %v921
          %923 = vdwg.mxu0
          %924 = vmatpush.msra.mxu0 0.0
          %925 = vmatpush.msra.mxu0 0.0
          %926 = vmatpush.msra.mxu0 0.0
          %927 = vmatpush.msra.mxu0 0.0
          %928 = vmatpush.msra.mxu0 0.0
          %929 = vmatpush.msra.mxu0 0.0
          %930 = vmatpush.msra.mxu0 0.0
          %931 = vmatpush.msra.mxu0 0.0
          %932 = vmatpush.msra.mxu0 0.0
          %933 = vmatpush.msra.mxu0 0.0
          %934 = vmatpush.msra.mxu0 0.0
          %935 = vmatpush.msra.mxu0 0.0
          %936 = vmatpush.msra.mxu0 0.0
          %937 = vmatpush.msra.mxu0 0.0
          %938 = vmatpush.msra.mxu0 0.0
          %939 = vmatpush.msra.mxu0 %v374
          %940 = vmatmul.f32.gmra.mxu0 %v317
          %v941 = vpop.f32.mrf.mxu0
          %v942 = vadd.f32 0.0, %v941
          %943 = vdwg.mxu0
          %944 = vmatpush.msra.mxu0 0.0
          %945 = vmatpush.msra.mxu0 0.0
          %946 = vmatpush.msra.mxu0 0.0
          %947 = vmatpush.msra.mxu0 0.0
          %948 = vmatpush.msra.mxu0 0.0
          %949 = vmatpush.msra.mxu0 0.0
          %950 = vmatpush.msra.mxu0 0.0
          %951 = vmatpush.msra.mxu0 0.0
          %952 = vmatpush.msra.mxu0 0.0
          %953 = vmatpush.msra.mxu0 0.0
          %954 = vmatpush.msra.mxu0 0.0
          %955 = vmatpush.msra.mxu0 0.0
          %956 = vmatpush.msra.mxu0 0.0
          %957 = vmatpush.msra.mxu0 0.0
          %958 = vmatpush.msra.mxu0 0.0
          %959 = vmatpush.msra.mxu0 %v376
          %960 = vmatmul.f32.gmra.mxu0 %v317
          %v961 = vpop.f32.mrf.mxu0
          %v962 = vadd.f32 0.0, %v961
          %963 = vdwg.mxu0
          %964 = vmatpush.msra.mxu0 0.0
          %965 = vmatpush.msra.mxu0 0.0
          %966 = vmatpush.msra.mxu0 0.0
          %967 = vmatpush.msra.mxu0 0.0
          %968 = vmatpush.msra.mxu0 0.0
          %969 = vmatpush.msra.mxu0 0.0
          %970 = vmatpush.msra.mxu0 0.0
          %971 = vmatpush.msra.mxu0 0.0
          %972 = vmatpush.msra.mxu0 0.0
          %973 = vmatpush.msra.mxu0 0.0
          %974 = vmatpush.msra.mxu0 0.0
          %975 = vmatpush.msra.mxu0 0.0
          %976 = vmatpush.msra.mxu0 0.0
          %977 = vmatpush.msra.mxu0 0.0
          %978 = vmatpush.msra.mxu0 0.0
          %979 = vmatpush.msra.mxu0 %v378
          %980 = vmatmul.f32.gmra.mxu0 %v317
          %v981 = vpop.f32.mrf.mxu0
          %v982 = vadd.f32 0.0, %v981
          %983 = vdwg.mxu0
          %984 = vmatpush.msra.mxu0 0.0
          %985 = vmatpush.msra.mxu0 0.0
          %986 = vmatpush.msra.mxu0 0.0
          %987 = vmatpush.msra.mxu0 0.0
          %988 = vmatpush.msra.mxu0 0.0
          %989 = vmatpush.msra.mxu0 0.0
          %990 = vmatpush.msra.mxu0 0.0
          %991 = vmatpush.msra.mxu0 0.0
          %992 = vmatpush.msra.mxu0 0.0
          %993 = vmatpush.msra.mxu0 0.0
          %994 = vmatpush.msra.mxu0 0.0
          %995 = vmatpush.msra.mxu0 0.0
          %996 = vmatpush.msra.mxu0 0.0
          %997 = vmatpush.msra.mxu0 0.0
          %998 = vmatpush.msra.mxu0 0.0
          %999 = vmatpush.msra.mxu0 %v380
          %1000 = vmatmul.f32.gmra.mxu0 %v317
          %v1001 = vpop.f32.mrf.mxu0
          %v1002 = vadd.f32 0.0, %v1001
          %1003 = vdwg.mxu0
          %1004 = vmatpush.msra.mxu0 0.0
          %1005 = vmatpush.msra.mxu0 0.0
          %1006 = vmatpush.msra.mxu0 0.0
          %1007 = vmatpush.msra.mxu0 0.0
          %1008 = vmatpush.msra.mxu0 0.0
          %1009 = vmatpush.msra.mxu0 0.0
          %1010 = vmatpush.msra.mxu0 0.0
          %1011 = vmatpush.msra.mxu0 0.0
          %1012 = vmatpush.msra.mxu0 0.0
          %1013 = vmatpush.msra.mxu0 0.0
          %1014 = vmatpush.msra.mxu0 0.0
          %1015 = vmatpush.msra.mxu0 0.0
          %1016 = vmatpush.msra.mxu0 0.0
          %1017 = vmatpush.msra.mxu0 0.0
          %1018 = vmatpush.msra.mxu0 0.0
          %1019 = vmatpush.msra.mxu0 %v382
          %1020 = vmatmul.f32.gmra.mxu0 %v317
          %v1021 = vpop.f32.mrf.mxu0
          %v1022 = vadd.f32 0.0, %v1021
          %1023 = vdwg.mxu0
          %v1024 = vlaneseq
          %v1025 = vand.u32 %v1024, 127
          %v1026 = vadd.s32 %v1025, 128
          %v1027 = vadd.s32 %v1025, 256
          %v1028 = vadd.s32 %v1025, 384
          %v1029 = vadd.s32 %v1025, 512
          %v1030 = vadd.s32 %v1025, 640
          %v1031 = vadd.s32 %v1025, 768
          %v1032 = vadd.s32 %v1025, 896
          %v1033 = vadd.s32 %v1025, 1024
          %v1034 = vadd.s32 %v1025, 1152
          %v1035 = vadd.s32 %v1025, 1280
          %v1036 = vadd.s32 %v1025, 1408
          %v1037 = vadd.s32 %v1025, 1536
          %v1038 = vadd.s32 %v1025, 1664
          %v1039 = vadd.s32 %v1025, 1792
          %v1040 = vadd.s32 %v1025, 1920
          %v1041 = vadd.s32 %v1025, 2048
          %v1042 = vadd.s32 %v1025, 2176
          %v1043 = vadd.s32 %v1025, 2304
          %v1044 = vadd.s32 %v1025, 2432
          %v1045 = vadd.s32 %v1025, 2560
          %v1046 = vadd.s32 %v1025, 2688
          %v1047 = vadd.s32 %v1025, 2816
          %v1048 = vadd.s32 %v1025, 2944
          %v1049 = vadd.s32 %v1025, 3072
          %v1050 = vadd.s32 %v1025, 3200
          %v1051 = vadd.s32 %v1025, 3328
          %v1052 = vadd.s32 %v1025, 3456
          %v1053 = vadd.s32 %v1025, 3584
          %v1054 = vadd.s32 %v1025, 3712
          %v1055 = vadd.s32 %v1025, 3840
          %v1056 = vadd.s32 %v1025, 3968
          %v1057 = vstv %s219
          %v1058 = vadd.s32 %v1057, %v1025
          %v1059 = vadd.s32 %v1057, %v1026
          %v1060 = vadd.s32 %v1057, %v1027
          %v1061 = vadd.s32 %v1057, %v1028
          %v1062 = vadd.s32 %v1057, %v1029
          %v1063 = vadd.s32 %v1057, %v1030
          %v1064 = vadd.s32 %v1057, %v1031
          %v1065 = vadd.s32 %v1057, %v1032
          %v1066 = vadd.s32 %v1057, %v1033
          %v1067 = vadd.s32 %v1057, %v1034
          %v1068 = vadd.s32 %v1057, %v1035
          %v1069 = vadd.s32 %v1057, %v1036
          %v1070 = vadd.s32 %v1057, %v1037
          %v1071 = vadd.s32 %v1057, %v1038
          %v1072 = vadd.s32 %v1057, %v1039
          %v1073 = vadd.s32 %v1057, %v1040
          %v1074 = vadd.s32 %v1057, %v1041
          %v1075 = vadd.s32 %v1057, %v1042
          %v1076 = vadd.s32 %v1057, %v1043
          %v1077 = vadd.s32 %v1057, %v1044
          %v1078 = vadd.s32 %v1057, %v1045
          %v1079 = vadd.s32 %v1057, %v1046
          %v1080 = vadd.s32 %v1057, %v1047
          %v1081 = vadd.s32 %v1057, %v1048
          %v1082 = vadd.s32 %v1057, %v1049
          %v1083 = vadd.s32 %v1057, %v1050
          %v1084 = vadd.s32 %v1057, %v1051
          %v1085 = vadd.s32 %v1057, %v1052
          %v1086 = vadd.s32 %v1057, %v1053
          %v1087 = vadd.s32 %v1057, %v1054
          %v1088 = vadd.s32 %v1057, %v1055
          %v1089 = vadd.s32 %v1057, %v1056
          %vm1090 = vcmp.lt.s32.totalorder %v1058, 4096
          %vm1091 = vcmp.lt.s32.totalorder %v1059, 4096
          %vm1092 = vcmp.lt.s32.totalorder %v1060, 4096
          %vm1093 = vcmp.lt.s32.totalorder %v1061, 4096
          %vm1094 = vcmp.lt.s32.totalorder %v1062, 4096
          %vm1095 = vcmp.lt.s32.totalorder %v1063, 4096
          %vm1096 = vcmp.lt.s32.totalorder %v1064, 4096
          %vm1097 = vcmp.lt.s32.totalorder %v1065, 4096
          %vm1098 = vcmp.lt.s32.totalorder %v1066, 4096
          %vm1099 = vcmp.lt.s32.totalorder %v1067, 4096
          %vm1100 = vcmp.lt.s32.totalorder %v1068, 4096
          %vm1101 = vcmp.lt.s32.totalorder %v1069, 4096
          %vm1102 = vcmp.lt.s32.totalorder %v1070, 4096
          %vm1103 = vcmp.lt.s32.totalorder %v1071, 4096
          %vm1104 = vcmp.lt.s32.totalorder %v1072, 4096
          %vm1105 = vcmp.lt.s32.totalorder %v1073, 4096
          %vm1106 = vcmp.lt.s32.totalorder %v1074, 4096
          %vm1107 = vcmp.lt.s32.totalorder %v1075, 4096
          %vm1108 = vcmp.lt.s32.totalorder %v1076, 4096
          %vm1109 = vcmp.lt.s32.totalorder %v1077, 4096
          %vm1110 = vcmp.lt.s32.totalorder %v1078, 4096
          %vm1111 = vcmp.lt.s32.totalorder %v1079, 4096
          %vm1112 = vcmp.lt.s32.totalorder %v1080, 4096
          %vm1113 = vcmp.lt.s32.totalorder %v1081, 4096
          %vm1114 = vcmp.lt.s32.totalorder %v1082, 4096
          %vm1115 = vcmp.lt.s32.totalorder %v1083, 4096
          %vm1116 = vcmp.lt.s32.totalorder %v1084, 4096
          %vm1117 = vcmp.lt.s32.totalorder %v1085, 4096
          %vm1118 = vcmp.lt.s32.totalorder %v1086, 4096
          %vm1119 = vcmp.lt.s32.totalorder %v1087, 4096
          %vm1120 = vcmp.lt.s32.totalorder %v1088, 4096
          %vm1121 = vcmp.lt.s32.totalorder %v1089, 4096
          %s1122 = ssub.s32 4096, %s219
          %p1123 = scmp.gt.s32.totalorder %s1122, 0
          %s1124 = scalar_select %p1123, %s1122, 0
          %p1125 = scmp.lt.s32.totalorder %s1124, 4096
          %s1126 = scalar_select %p1125, %s1124, 4096
          %p1127 = scmp.lt.s32.totalorder %s219, 4096
          %s1128 = scalar_select %p1127, %s219, 4096
          %s1129 = scvt.s32.f32 %s1126
          %s1130 = scvt.s32.f32 %s1128
          %v1131 = vsel %vm1090, %v402, 0.0
          %v1132 = vsel %vm1091, %v422, 0.0
          %v1133 = vsel %vm1092, %v442, 0.0
          %v1134 = vsel %vm1093, %v462, 0.0
          %v1135 = vsel %vm1094, %v482, 0.0
          %v1136 = vsel %vm1095, %v502, 0.0
          %v1137 = vsel %vm1096, %v522, 0.0
          %v1138 = vsel %vm1097, %v542, 0.0
          %v1139 = vsel %vm1098, %v562, 0.0
          %v1140 = vsel %vm1099, %v582, 0.0
          %v1141 = vsel %vm1100, %v602, 0.0
          %v1142 = vsel %vm1101, %v622, 0.0
          %v1143 = vsel %vm1102, %v642, 0.0
          %v1144 = vsel %vm1103, %v662, 0.0
          %v1145 = vsel %vm1104, %v682, 0.0
          %v1146 = vsel %vm1105, %v702, 0.0
          %v1147 = vsel %vm1106, %v722, 0.0
          %v1148 = vsel %vm1107, %v742, 0.0
          %v1149 = vsel %vm1108, %v762, 0.0
          %v1150 = vsel %vm1109, %v782, 0.0
          %v1151 = vsel %vm1110, %v802, 0.0
          %v1152 = vsel %vm1111, %v822, 0.0
          %v1153 = vsel %vm1112, %v842, 0.0
          %v1154 = vsel %vm1113, %v862, 0.0
          %v1155 = vsel %vm1114, %v882, 0.0
          %v1156 = vsel %vm1115, %v902, 0.0
          %v1157 = vsel %vm1116, %v922, 0.0
          %v1158 = vsel %vm1117, %v942, 0.0
          %v1159 = vsel %vm1118, %v962, 0.0
          %v1160 = vsel %vm1119, %v982, 0.0
          %v1161 = vsel %vm1120, %v1002, 0.0
          %v1162 = vsel %vm1121, %v1022, 0.0
          %v1163 = vadd.f32 %v1131, %v1132
          %v1164 = vadd.f32 %v1163, %v1133
          %v1165 = vadd.f32 %v1164, %v1134
          %v1166 = vadd.f32 %v1165, %v1135
          %v1167 = vadd.f32 %v1166, %v1136
          %v1168 = vadd.f32 %v1167, %v1137
          %v1169 = vadd.f32 %v1168, %v1138
          %v1170 = vadd.f32 %v1169, %v1139
          %v1171 = vadd.f32 %v1170, %v1140
          %v1172 = vadd.f32 %v1171, %v1141
          %v1173 = vadd.f32 %v1172, %v1142
          %v1174 = vadd.f32 %v1173, %v1143
          %v1175 = vadd.f32 %v1174, %v1144
          %v1176 = vadd.f32 %v1175, %v1145
          %v1177 = vadd.f32 %v1176, %v1146
          %v1178 = vadd.f32 %v1177, %v1147
          %v1179 = vadd.f32 %v1178, %v1148
          %v1180 = vadd.f32 %v1179, %v1149
          %v1181 = vadd.f32 %v1180, %v1150
          %v1182 = vadd.f32 %v1181, %v1151
          %v1183 = vadd.f32 %v1182, %v1152
          %v1184 = vadd.f32 %v1183, %v1153
          %v1185 = vadd.f32 %v1184, %v1154
          %v1186 = vadd.f32 %v1185, %v1155
          %v1187 = vadd.f32 %v1186, %v1156
          %v1188 = vadd.f32 %v1187, %v1157
          %v1189 = vadd.f32 %v1188, %v1158
          %v1190 = vadd.f32 %v1189, %v1159
          %v1191 = vadd.f32 %v1190, %v1160
          %v1192 = vadd.f32 %v1191, %v1161
          %v1193 = vadd.f32 %v1192, %v1162
          %1194 = vadd.xlane.f32.xlu0 %v1193
          %v1195 = vpop.xlane.xlu0 %1194
          %s1196 = smax.f32 %s1129, 1.0
          %v1197 = vstv %s1196
          %v1198 = vrcp.pop %v1197
          %v1199 = vmul.f32 %v1197, %v1198
          %v1200 = vsub.f32 1.0, %v1199
          %v1201 = vmul.f32 %v1198, %v1200
          %v1202 = vadd.f32 %v1198, %v1201
          %vm1203 = vweird.f32 %v1197
          %vm1204 = vweird.f32 %v1198
          %vm1205 = vmor %vm1203, %vm1204
          %v1206 = vsel %vm1205, %v1198, %v1202
          %v1207 = vand.u32 2147483647, %v1197
          %vm1208 = vcmp.eq.f32.partialorder %v1207, 8.507059e+37
          %v1209 = vand.u32 %v1197, 2147483648
          %v1210 = vor.u32 1.1754944e-38, %v1209
          %v1211 = vsel %vm1208, %v1210, %v1206
          %v1212 = vmul.f32 %v1195, %v1211
          %v1213 = vsub.f32 %v402, %v1212
          %v1214 = vsub.f32 %v422, %v1212
          %v1215 = vsub.f32 %v442, %v1212
          %v1216 = vsub.f32 %v462, %v1212
          %v1217 = vsub.f32 %v482, %v1212
          %v1218 = vsub.f32 %v502, %v1212
          %v1219 = vsub.f32 %v522, %v1212
          %v1220 = vsub.f32 %v542, %v1212
          %v1221 = vsub.f32 %v562, %v1212
          %v1222 = vsub.f32 %v582, %v1212
          %v1223 = vsub.f32 %v602, %v1212
          %v1224 = vsub.f32 %v622, %v1212
          %v1225 = vsub.f32 %v642, %v1212
          %v1226 = vsub.f32 %v662, %v1212
          %v1227 = vsub.f32 %v682, %v1212
          %v1228 = vsub.f32 %v702, %v1212
          %v1229 = vsub.f32 %v722, %v1212
          %v1230 = vsub.f32 %v742, %v1212
          %v1231 = vsub.f32 %v762, %v1212
          %v1232 = vsub.f32 %v782, %v1212
          %v1233 = vsub.f32 %v802, %v1212
          %v1234 = vsub.f32 %v822, %v1212
          %v1235 = vsub.f32 %v842, %v1212
          %v1236 = vsub.f32 %v862, %v1212
          %v1237 = vsub.f32 %v882, %v1212
          %v1238 = vsub.f32 %v902, %v1212
          %v1239 = vsub.f32 %v922, %v1212
          %v1240 = vsub.f32 %v942, %v1212
          %v1241 = vsub.f32 %v962, %v1212
          %v1242 = vsub.f32 %v982, %v1212
          %v1243 = vsub.f32 %v1002, %v1212
          %v1244 = vsub.f32 %v1022, %v1212
          %v1245 = vsel %vm1090, %v1213, 0.0
          %v1246 = vsel %vm1091, %v1214, 0.0
          %v1247 = vsel %vm1092, %v1215, 0.0
          %v1248 = vsel %vm1093, %v1216, 0.0
          %v1249 = vsel %vm1094, %v1217, 0.0
          %v1250 = vsel %vm1095, %v1218, 0.0
          %v1251 = vsel %vm1096, %v1219, 0.0
          %v1252 = vsel %vm1097, %v1220, 0.0
          %v1253 = vsel %vm1098, %v1221, 0.0
          %v1254 = vsel %vm1099, %v1222, 0.0
          %v1255 = vsel %vm1100, %v1223, 0.0
          %v1256 = vsel %vm1101, %v1224, 0.0
          %v1257 = vsel %vm1102, %v1225, 0.0
          %v1258 = vsel %vm1103, %v1226, 0.0
          %v1259 = vsel %vm1104, %v1227, 0.0
          %v1260 = vsel %vm1105, %v1228, 0.0
          %v1261 = vsel %vm1106, %v1229, 0.0
          %v1262 = vsel %vm1107, %v1230, 0.0
          %v1263 = vsel %vm1108, %v1231, 0.0
          %v1264 = vsel %vm1109, %v1232, 0.0
          %v1265 = vsel %vm1110, %v1233, 0.0
          %v1266 = vsel %vm1111, %v1234, 0.0
          %v1267 = vsel %vm1112, %v1235, 0.0
          %v1268 = vsel %vm1113, %v1236, 0.0
          %v1269 = vsel %vm1114, %v1237, 0.0
          %v1270 = vsel %vm1115, %v1238, 0.0
          %v1271 = vsel %vm1116, %v1239, 0.0
          %v1272 = vsel %vm1117, %v1240, 0.0
          %v1273 = vsel %vm1118, %v1241, 0.0
          %v1274 = vsel %vm1119, %v1242, 0.0
          %v1275 = vsel %vm1120, %v1243, 0.0
          %v1276 = vsel %vm1121, %v1244, 0.0
          %v1277 = vmul.f32 %v1245, %v1245
          %v1278 = vmul.f32 %v1246, %v1246
          %v1279 = vmul.f32 %v1247, %v1247
          %v1280 = vmul.f32 %v1248, %v1248
          %v1281 = vmul.f32 %v1249, %v1249
          %v1282 = vmul.f32 %v1250, %v1250
          %v1283 = vmul.f32 %v1251, %v1251
          %v1284 = vmul.f32 %v1252, %v1252
          %v1285 = vmul.f32 %v1253, %v1253
          %v1286 = vmul.f32 %v1254, %v1254
          %v1287 = vmul.f32 %v1255, %v1255
          %v1288 = vmul.f32 %v1256, %v1256
          %v1289 = vmul.f32 %v1257, %v1257
          %v1290 = vmul.f32 %v1258, %v1258
          %v1291 = vmul.f32 %v1259, %v1259
          %v1292 = vmul.f32 %v1260, %v1260
          %v1293 = vmul.f32 %v1261, %v1261
          %v1294 = vmul.f32 %v1262, %v1262
          %v1295 = vmul.f32 %v1263, %v1263
          %v1296 = vmul.f32 %v1264, %v1264
          %v1297 = vmul.f32 %v1265, %v1265
          %v1298 = vmul.f32 %v1266, %v1266
          %v1299 = vmul.f32 %v1267, %v1267
          %v1300 = vmul.f32 %v1268, %v1268
          %v1301 = vmul.f32 %v1269, %v1269
          %v1302 = vmul.f32 %v1270, %v1270
          %v1303 = vmul.f32 %v1271, %v1271
          %v1304 = vmul.f32 %v1272, %v1272
          %v1305 = vmul.f32 %v1273, %v1273
          %v1306 = vmul.f32 %v1274, %v1274
          %v1307 = vmul.f32 %v1275, %v1275
          %v1308 = vmul.f32 %v1276, %v1276
          %v1309 = vadd.f32 %v1277, %v1278
          %v1310 = vadd.f32 %v1309, %v1279
          %v1311 = vadd.f32 %v1310, %v1280
          %v1312 = vadd.f32 %v1311, %v1281
          %v1313 = vadd.f32 %v1312, %v1282
          %v1314 = vadd.f32 %v1313, %v1283
          %v1315 = vadd.f32 %v1314, %v1284
          %v1316 = vadd.f32 %v1315, %v1285
          %v1317 = vadd.f32 %v1316, %v1286
          %v1318 = vadd.f32 %v1317, %v1287
          %v1319 = vadd.f32 %v1318, %v1288
          %v1320 = vadd.f32 %v1319, %v1289
          %v1321 = vadd.f32 %v1320, %v1290
          %v1322 = vadd.f32 %v1321, %v1291
          %v1323 = vadd.f32 %v1322, %v1292
          %v1324 = vadd.f32 %v1323, %v1293
          %v1325 = vadd.f32 %v1324, %v1294
          %v1326 = vadd.f32 %v1325, %v1295
          %v1327 = vadd.f32 %v1326, %v1296
          %v1328 = vadd.f32 %v1327, %v1297
          %v1329 = vadd.f32 %v1328, %v1298
          %v1330 = vadd.f32 %v1329, %v1299
          %v1331 = vadd.f32 %v1330, %v1300
          %v1332 = vadd.f32 %v1331, %v1301
          %v1333 = vadd.f32 %v1332, %v1302
          %v1334 = vadd.f32 %v1333, %v1303
          %v1335 = vadd.f32 %v1334, %v1304
          %v1336 = vadd.f32 %v1335, %v1305
          %v1337 = vadd.f32 %v1336, %v1306
          %v1338 = vadd.f32 %v1337, %v1307
          %v1339 = vadd.f32 %v1338, %v1308
          %1340 = vadd.xlane.f32.xlu0 %v1339
          %v1341 = vpop.xlane.xlu0 %1340
          %s1342 = sadd.f32 %s1130, %s1129
          %s1343 = smax.f32 %s1342, 1.0
          %v1344 = vstv %s1343
          %v1345 = vrcp.pop %v1344
          %v1346 = vmul.f32 %v1344, %v1345
          %v1347 = vsub.f32 1.0, %v1346
          %v1348 = vmul.f32 %v1345, %v1347
          %v1349 = vadd.f32 %v1345, %v1348
          %vm1350 = vweird.f32 %v1344
          %vm1351 = vweird.f32 %v1345
          %vm1352 = vmor %vm1350, %vm1351
          %v1353 = vsel %vm1352, %v1345, %v1349
          %v1354 = vand.u32 2147483647, %v1344
          %vm1355 = vcmp.eq.f32.partialorder %v1354, 8.507059e+37
          %v1356 = vand.u32 %v1344, 2147483648
          %v1357 = vor.u32 1.1754944e-38, %v1356
          %v1358 = vsel %vm1355, %v1357, %v1353
          %s1359 = vtos %v1358
          %v1360 = vld [vmem:[#allocation2] sm:$0xff]
          %v1361 = vsub.f32 %v1212, %v1360
          %s1362 = smul.f32 %s1129, %s1359
          %v1363 = vstv %s1362
          %v1364 = vmul.f32 %v1361, %v1363
          %v1365 = vadd.f32 %v1360, %v1364
          %vm1366 = vcmask 7168
          %1367 = vst.msk [vmem:[#allocation2] sm:$0xff] %vm1366, %v1365
          %v1368 = vld [vmem:[#allocation3] sm:$0xff]
          %v1369 = vadd.f32 %v1368, %v1341
          %v1370 = vmul.f32 %v1361, %v1361
          %s1371 = smul.f32 %s1130, %s1129
          %s1372 = smul.f32 %s1371, %s1359
          %v1373 = vstv %s1372
          %v1374 = vmul.f32 %v1370, %v1373
          %v1375 = vadd.f32 %v1369, %v1374
          %1376 = vst.msk [vmem:[#allocation3] sm:$0xff] %vm1366, %v1375
        $region40: #{tpu_custom_call.1} parent=31 // pred_fallthru
          _
        %p1377 = scmp.eq.s32.totalorder %s26, 1
        // Predicated region
        $region45: #{tpu_custom_call.1} parent=31 // pred_check
          %p1378 = pneg %p1377
        $region46: #{tpu_custom_call.1} parent=31 // pred_check_branch
          %1380 = sbr.rel (%p1378) target = $region48
        $region47: #{tpu_custom_call.1} parent=31 // pred_region
          %p1381 = scmp.eq.s32.totalorder %s27, 0
          // Predicated region
          $region49: #{tpu_custom_call.1} parent=47 // pred_check
            %p1382 = pneg %p1381
          $region50: #{tpu_custom_call.1} parent=47 // pred_check_branch
            %1384 = sbr.rel (%p1382) target = $region52
          $region51: #{tpu_custom_call.1} parent=47 // pred_region
            %v1385 = vld [vmem:[#allocation3] sm:$0xff]
            %v1386 = vmul.f32 %v1385, 0.00024414063
            %v1387 = vld [vmem:[%s2] sm:$0xff]
            %v1388 = vadd.f32 %v1386, 1e-05
            %v1389 = vrsqrt.pop %v1388
            %v1390 = vmul.f32 %v1389, %v1388
            %v1391 = vmul.f32 %v1390, %v1389
            %v1392 = vmul.f32 0.5, %v1391
            %v1393 = vsub.f32 1.5, %v1392
            %v1394 = vmul.f32 %v1389, %v1393
            %vm1395 = vweird.f32 %v1388
            %vm1396 = vweird.f32 %v1389
            %vm1397 = vmor %vm1395, %vm1396
            %v1398 = vsel %vm1397, %v1389, %v1394
            %v1399 = vmul.f32 %v1387, %v1398
            %vm1400 = vcmask 7168
            %1401 = vst.msk [vmem:[#allocation4] sm:$0xff] %vm1400, %v1399
            %s1402 = scalar_lea.vmem %s2, 8
            %v1403 = vld [vmem:[%s1402] sm:$0xff]
            %v1404 = vld [vmem:[#allocation2] sm:$0xff]
            %v1405 = vmul.f32 %v1404, %v1399
            %v1406 = vsub.f32 %v1403, %v1405
            %1407 = vst.msk [vmem:[#allocation5] sm:$0xff] %vm1400, %v1406
          $region52: #{tpu_custom_call.1} parent=47 // pred_fallthru
            _
          %v1408 = vld [vmem:[%s192] sm:$0xff]
          %v1409 = vld [vmem:[%s192 + $0x8] sm:$0xff]
          %v1410 = vld [vmem:[%s192 + $0x10] sm:$0xff]
          %v1411 = vld [vmem:[%s192 + $0x18] sm:$0xff]
          %v1412 = vld [vmem:[%s192 + $0x20] sm:$0xff]
          %v1413 = vld [vmem:[%s192 + $0x28] sm:$0xff]
          %v1414 = vld [vmem:[%s192 + $0x30] sm:$0xff]
          %v1415 = vld [vmem:[%s192 + $0x38] sm:$0xff]
          %v1416 = vld [vmem:[%s192 + $0x40] sm:$0xff]
          %v1417 = vld [vmem:[%s192 + $0x48] sm:$0xff]
          %v1418 = vld [vmem:[%s192 + $0x50] sm:$0xff]
          %v1419 = vld [vmem:[%s192 + $0x58] sm:$0xff]
          %v1420 = vld [vmem:[%s192 + $0x60] sm:$0xff]
          %v1421 = vld [vmem:[%s192 + $0x68] sm:$0xff]
          %v1422 = vld [vmem:[%s192 + $0x70] sm:$0xff]
          %v1423 = vld [vmem:[%s192 + $0x78] sm:$0xff]
          %1440 = vst [vmem:[#allocation1] ss:$2 sm:$0xff] %v1408
          %s1441 = scalar_lea.vmem [#allocation1], 16
          %1442 = vst [vmem:[%s1441] ss:$2 sm:$0xff] %v1409
          %s1443 = scalar_lea.vmem [#allocation1], 32
          %1444 = vst [vmem:[%s1443] ss:$2 sm:$0xff] %v1410
          %s1445 = scalar_lea.vmem [#allocation1], 48
          %1446 = vst [vmem:[%s1445] ss:$2 sm:$0xff] %v1411
          %v1447 = vld.sshfl [vmem:[#allocation1] sm:$0xff pattern:$0x75316420]
          %v1448 = vld.sshfl [vmem:[#allocation1 + $0x8] sm:$0xff pattern:$0x75316420]
          %v1449 = vld.sshfl [vmem:[#allocation1 + $0x10] sm:$0xff pattern:$0x75316420]
          %v1450 = vld.sshfl [vmem:[#allocation1 + $0x18] sm:$0xff pattern:$0x75316420]
          %v1451 = vld.sshfl [vmem:[#allocation1 + $0x20] sm:$0xff pattern:$0x75316420]
          %v1452 = vld.sshfl [vmem:[#allocation1 + $0x28] sm:$0xff pattern:$0x75316420]
          %v1453 = vld.sshfl [vmem:[#allocation1 + $0x30] sm:$0xff pattern:$0x75316420]
          %v1454 = vld.sshfl [vmem:[#allocation1 + $0x38] sm:$0xff pattern:$0x75316420]
          %1455 = vst [vmem:[#allocation1] ss:$2 sm:$0xff] %v1412
          %1456 = vst [vmem:[%s1441] ss:$2 sm:$0xff] %v1413
          %1457 = vst [vmem:[%s1443] ss:$2 sm:$0xff] %v1414
          %1458 = vst [vmem:[%s1445] ss:$2 sm:$0xff] %v1415
          %v1459 = vld.sshfl [vmem:[#allocation1] sm:$0xff pattern:$0x75316420]
          %v1460 = vld.sshfl [vmem:[#allocation1 + $0x8] sm:$0xff pattern:$0x75316420]
          %v1461 = vld.sshfl [vmem:[#allocation1 + $0x10] sm:$0xff pattern:$0x75316420]
          %v1462 = vld.sshfl [vmem:[#allocation1 + $0x18] sm:$0xff pattern:$0x75316420]
          %v1463 = vld.sshfl [vmem:[#allocation1 + $0x20] sm:$0xff pattern:$0x75316420]
          %v1464 = vld.sshfl [vmem:[#allocation1 + $0x28] sm:$0xff pattern:$0x75316420]
          %v1465 = vld.sshfl [vmem:[#allocation1 + $0x30] sm:$0xff pattern:$0x75316420]
          %v1466 = vld.sshfl [vmem:[#allocation1 + $0x38] sm:$0xff pattern:$0x75316420]
          %1467 = vst [vmem:[#allocation1] ss:$2 sm:$0xff] %v1416
          %1468 = vst [vmem:[%s1441] ss:$2 sm:$0xff] %v1417
          %1469 = vst [vmem:[%s1443] ss:$2 sm:$0xff] %v1418
          %1470 = vst [vmem:[%s1445] ss:$2 sm:$0xff] %v1419
          %v1471 = vld.sshfl [vmem:[#allocation1] sm:$0xff pattern:$0x75316420]
          %v1472 = vld.sshfl [vmem:[#allocation1 + $0x8] sm:$0xff pattern:$0x75316420]
          %v1473 = vld.sshfl [vmem:[#allocation1 + $0x10] sm:$0xff pattern:$0x75316420]
          %v1474 = vld.sshfl [vmem:[#allocation1 + $0x18] sm:$0xff pattern:$0x75316420]
          %v1475 = vld.sshfl [vmem:[#allocation1 + $0x20] sm:$0xff pattern:$0x75316420]
          %v1476 = vld.sshfl [vmem:[#allocation1 + $0x28] sm:$0xff pattern:$0x75316420]
          %v1477 = vld.sshfl [vmem:[#allocation1 + $0x30] sm:$0xff pattern:$0x75316420]
          %v1478 = vld.sshfl [vmem:[#allocation1 + $0x38] sm:$0xff pattern:$0x75316420]
          %1479 = vst [vmem:[#allocation1] ss:$2 sm:$0xff] %v1420
          %1480 = vst [vmem:[%s1441] ss:$2 sm:$0xff] %v1421
          %1481 = vst [vmem:[%s1443] ss:$2 sm:$0xff] %v1422
          %1482 = vst [vmem:[%s1445] ss:$2 sm:$0xff] %v1423
          %v1483 = vld.sshfl [vmem:[#allocation1] sm:$0xff pattern:$0x75316420]
          %v1484 = vld.sshfl [vmem:[#allocation1 + $0x8] sm:$0xff pattern:$0x75316420]
          %v1485 = vld.sshfl [vmem:[#allocation1 + $0x10] sm:$0xff pattern:$0x75316420]
          %v1486 = vld.sshfl [vmem:[#allocation1 + $0x18] sm:$0xff pattern:$0x75316420]
          %v1487 = vld.sshfl [vmem:[#allocation1 + $0x20] sm:$0xff pattern:$0x75316420]
          %v1488 = vld.sshfl [vmem:[#allocation1 + $0x28] sm:$0xff pattern:$0x75316420]
          %v1489 = vld.sshfl [vmem:[#allocation1 + $0x30] sm:$0xff pattern:$0x75316420]
          %v1490 = vld.sshfl [vmem:[#allocation1 + $0x38] sm:$0xff pattern:$0x75316420]
          %vm1491 = vcmask 31744
          %v1493 = vsel %vm1491, %v220, 0
          %vm1495 = vcmask 1043456
          %v1496 = vsel %vm1495, %v1447, 0
          %v1498 = vsel %vm1495, %v1448, 0
          %v1500 = vsel %vm1495, %v1449, 0
          %v1502 = vsel %vm1495, %v1450, 0
          %v1504 = vsel %vm1495, %v1451, 0
          %v1506 = vsel %vm1495, %v1452, 0
          %v1508 = vsel %vm1495, %v1453, 0
          %v1510 = vsel %vm1495, %v1454, 0
          %v1512 = vsel %vm1495, %v1459, 0
          %v1514 = vsel %vm1495, %v1460, 0
          %v1516 = vsel %vm1495, %v1461, 0
          %v1518 = vsel %vm1495, %v1462, 0
          %v1520 = vsel %vm1495, %v1463, 0
          %v1522 = vsel %vm1495, %v1464, 0
          %v1524 = vsel %vm1495, %v1465, 0
          %v1526 = vsel %vm1495, %v1466, 0
          %v1528 = vsel %vm1495, %v1471, 0
          %v1530 = vsel %vm1495, %v1472, 0
          %v1532 = vsel %vm1495, %v1473, 0
          %v1534 = vsel %vm1495, %v1474, 0
          %v1536 = vsel %vm1495, %v1475, 0
          %v1538 = vsel %vm1495, %v1476, 0
          %v1540 = vsel %vm1495, %v1477, 0
          %v1542 = vsel %vm1495, %v1478, 0
          %v1544 = vsel %vm1495, %v1483, 0
          %v1546 = vsel %vm1495, %v1484, 0
          %v1548 = vsel %vm1495, %v1485, 0
          %v1550 = vsel %vm1495, %v1486, 0
          %v1552 = vsel %vm1495, %v1487, 0
          %v1554 = vsel %vm1495, %v1488, 0
          %v1556 = vsel %vm1495, %v1489, 0
          %v1558 = vsel %vm1495, %v1490, 0
          %1560 = vmatpush.msra.mxu0 0.0
          %1561 = vmatpush.msra.mxu0 0.0
          %1562 = vmatpush.msra.mxu0 0.0
          %1563 = vmatpush.msra.mxu0 0.0
          %1564 = vmatpush.msra.mxu0 0.0
          %1565 = vmatpush.msra.mxu0 0.0
          %1566 = vmatpush.msra.mxu0 0.0
          %1567 = vmatpush.msra.mxu0 0.0
          %1568 = vmatpush.msra.mxu0 0.0
          %1569 = vmatpush.msra.mxu0 0.0
          %1570 = vmatpush.msra.mxu0 0.0
          %1571 = vmatpush.msra.mxu0 0.0
          %1572 = vmatpush.msra.mxu0 0.0
          %1573 = vmatpush.msra.mxu0 0.0
          %1574 = vmatpush.msra.mxu0 0.0
          %1575 = vmatpush.msra.mxu0 %v1496
          %1576 = vmatmul.f32.gmra.mxu0 %v1493
          %v1577 = vpop.f32.mrf.mxu0
          %v1578 = vadd.f32 0.0, %v1577
          %1579 = vdwg.mxu0
          %1580 = vmatpush.msra.mxu0 0.0
          %1581 = vmatpush.msra.mxu0 0.0
          %1582 = vmatpush.msra.mxu0 0.0
          %1583 = vmatpush.msra.mxu0 0.0
          %1584 = vmatpush.msra.mxu0 0.0
          %1585 = vmatpush.msra.mxu0 0.0
          %1586 = vmatpush.msra.mxu0 0.0
          %1587 = vmatpush.msra.mxu0 0.0
          %1588 = vmatpush.msra.mxu0 0.0
          %1589 = vmatpush.msra.mxu0 0.0
          %1590 = vmatpush.msra.mxu0 0.0
          %1591 = vmatpush.msra.mxu0 0.0
          %1592 = vmatpush.msra.mxu0 0.0
          %1593 = vmatpush.msra.mxu0 0.0
          %1594 = vmatpush.msra.mxu0 0.0
          %1595 = vmatpush.msra.mxu0 %v1498
          %1596 = vmatmul.f32.gmra.mxu0 %v1493
          %v1597 = vpop.f32.mrf.mxu0
          %v1598 = vadd.f32 0.0, %v1597
          %1599 = vdwg.mxu0
          %1600 = vmatpush.msra.mxu0 0.0
          %1601 = vmatpush.msra.mxu0 0.0
          %1602 = vmatpush.msra.mxu0 0.0
          %1603 = vmatpush.msra.mxu0 0.0
          %1604 = vmatpush.msra.mxu0 0.0
          %1605 = vmatpush.msra.mxu0 0.0
          %1606 = vmatpush.msra.mxu0 0.0
          %1607 = vmatpush.msra.mxu0 0.0
          %1608 = vmatpush.msra.mxu0 0.0
          %1609 = vmatpush.msra.mxu0 0.0
          %1610 = vmatpush.msra.mxu0 0.0
          %1611 = vmatpush.msra.mxu0 0.0
          %1612 = vmatpush.msra.mxu0 0.0
          %1613 = vmatpush.msra.mxu0 0.0
          %1614 = vmatpush.msra.mxu0 0.0
          %1615 = vmatpush.msra.mxu0 %v1500
          %1616 = vmatmul.f32.gmra.mxu0 %v1493
          %v1617 = vpop.f32.mrf.mxu0
          %v1618 = vadd.f32 0.0, %v1617
          %1619 = vdwg.mxu0
          %1620 = vmatpush.msra.mxu0 0.0
          %1621 = vmatpush.msra.mxu0 0.0
          %1622 = vmatpush.msra.mxu0 0.0
          %1623 = vmatpush.msra.mxu0 0.0
          %1624 = vmatpush.msra.mxu0 0.0
          %1625 = vmatpush.msra.mxu0 0.0
          %1626 = vmatpush.msra.mxu0 0.0
          %1627 = vmatpush.msra.mxu0 0.0
          %1628 = vmatpush.msra.mxu0 0.0
          %1629 = vmatpush.msra.mxu0 0.0
          %1630 = vmatpush.msra.mxu0 0.0
          %1631 = vmatpush.msra.mxu0 0.0
          %1632 = vmatpush.msra.mxu0 0.0
          %1633 = vmatpush.msra.mxu0 0.0
          %1634 = vmatpush.msra.mxu0 0.0
          %1635 = vmatpush.msra.mxu0 %v1502
          %1636 = vmatmul.f32.gmra.mxu0 %v1493
          %v1637 = vpop.f32.mrf.mxu0
          %v1638 = vadd.f32 0.0, %v1637
          %1639 = vdwg.mxu0
          %1640 = vmatpush.msra.mxu0 0.0
          %1641 = vmatpush.msra.mxu0 0.0
          %1642 = vmatpush.msra.mxu0 0.0
          %1643 = vmatpush.msra.mxu0 0.0
          %1644 = vmatpush.msra.mxu0 0.0
          %1645 = vmatpush.msra.mxu0 0.0
          %1646 = vmatpush.msra.mxu0 0.0
          %1647 = vmatpush.msra.mxu0 0.0
          %1648 = vmatpush.msra.mxu0 0.0
          %1649 = vmatpush.msra.mxu0 0.0
          %1650 = vmatpush.msra.mxu0 0.0
          %1651 = vmatpush.msra.mxu0 0.0
          %1652 = vmatpush.msra.mxu0 0.0
          %1653 = vmatpush.msra.mxu0 0.0
          %1654 = vmatpush.msra.mxu0 0.0
          %1655 = vmatpush.msra.mxu0 %v1504
          %1656 = vmatmul.f32.gmra.mxu0 %v1493
          %v1657 = vpop.f32.mrf.mxu0
          %v1658 = vadd.f32 0.0, %v1657
          %1659 = vdwg.mxu0
          %1660 = vmatpush.msra.mxu0 0.0
          %1661 = vmatpush.msra.mxu0 0.0
          %1662 = vmatpush.msra.mxu0 0.0
          %1663 = vmatpush.msra.mxu0 0.0
          %1664 = vmatpush.msra.mxu0 0.0
          %1665 = vmatpush.msra.mxu0 0.0
          %1666 = vmatpush.msra.mxu0 0.0
          %1667 = vmatpush.msra.mxu0 0.0
          %1668 = vmatpush.msra.mxu0 0.0
          %1669 = vmatpush.msra.mxu0 0.0
          %1670 = vmatpush.msra.mxu0 0.0
          %1671 = vmatpush.msra.mxu0 0.0
          %1672 = vmatpush.msra.mxu0 0.0
          %1673 = vmatpush.msra.mxu0 0.0
          %1674 = vmatpush.msra.mxu0 0.0
          %1675 = vmatpush.msra.mxu0 %v1506
          %1676 = vmatmul.f32.gmra.mxu0 %v1493
          %v1677 = vpop.f32.mrf.mxu0
          %v1678 = vadd.f32 0.0, %v1677
          %1679 = vdwg.mxu0
          %1680 = vmatpush.msra.mxu0 0.0
          %1681 = vmatpush.msra.mxu0 0.0
          %1682 = vmatpush.msra.mxu0 0.0
          %1683 = vmatpush.msra.mxu0 0.0
          %1684 = vmatpush.msra.mxu0 0.0
          %1685 = vmatpush.msra.mxu0 0.0
          %1686 = vmatpush.msra.mxu0 0.0
          %1687 = vmatpush.msra.mxu0 0.0
          %1688 = vmatpush.msra.mxu0 0.0
          %1689 = vmatpush.msra.mxu0 0.0
          %1690 = vmatpush.msra.mxu0 0.0
          %1691 = vmatpush.msra.mxu0 0.0
          %1692 = vmatpush.msra.mxu0 0.0
          %1693 = vmatpush.msra.mxu0 0.0
          %1694 = vmatpush.msra.mxu0 0.0
          %1695 = vmatpush.msra.mxu0 %v1508
          %1696 = vmatmul.f32.gmra.mxu0 %v1493
          %v1697 = vpop.f32.mrf.mxu0
          %v1698 = vadd.f32 0.0, %v1697
          %1699 = vdwg.mxu0
          %1700 = vmatpush.msra.mxu0 0.0
          %1701 = vmatpush.msra.mxu0 0.0
          %1702 = vmatpush.msra.mxu0 0.0
          %1703 = vmatpush.msra.mxu0 0.0
          %1704 = vmatpush.msra.mxu0 0.0
          %1705 = vmatpush.msra.mxu0 0.0
          %1706 = vmatpush.msra.mxu0 0.0
          %1707 = vmatpush.msra.mxu0 0.0
          %1708 = vmatpush.msra.mxu0 0.0
          %1709 = vmatpush.msra.mxu0 0.0
          %1710 = vmatpush.msra.mxu0 0.0
          %1711 = vmatpush.msra.mxu0 0.0
          %1712 = vmatpush.msra.mxu0 0.0
          %1713 = vmatpush.msra.mxu0 0.0
          %1714 = vmatpush.msra.mxu0 0.0
          %1715 = vmatpush.msra.mxu0 %v1510
          %1716 = vmatmul.f32.gmra.mxu0 %v1493
          %v1717 = vpop.f32.mrf.mxu0
          %v1718 = vadd.f32 0.0, %v1717
          %1719 = vdwg.mxu0
          %1720 = vmatpush.msra.mxu0 0.0
          %1721 = vmatpush.msra.mxu0 0.0
          %1722 = vmatpush.msra.mxu0 0.0
          %1723 = vmatpush.msra.mxu0 0.0
          %1724 = vmatpush.msra.mxu0 0.0
          %1725 = vmatpush.msra.mxu0 0.0
          %1726 = vmatpush.msra.mxu0 0.0
          %1727 = vmatpush.msra.mxu0 0.0
          %1728 = vmatpush.msra.mxu0 0.0
          %1729 = vmatpush.msra.mxu0 0.0
          %1730 = vmatpush.msra.mxu0 0.0
          %1731 = vmatpush.msra.mxu0 0.0
          %1732 = vmatpush.msra.mxu0 0.0
          %1733 = vmatpush.msra.mxu0 0.0
          %1734 = vmatpush.msra.mxu0 0.0
          %1735 = vmatpush.msra.mxu0 %v1512
          %1736 = vmatmul.f32.gmra.mxu0 %v1493
          %v1737 = vpop.f32.mrf.mxu0
          %v1738 = vadd.f32 0.0, %v1737
          %1739 = vdwg.mxu0
          %1740 = vmatpush.msra.mxu0 0.0
          %1741 = vmatpush.msra.mxu0 0.0
          %1742 = vmatpush.msra.mxu0 0.0
          %1743 = vmatpush.msra.mxu0 0.0
          %1744 = vmatpush.msra.mxu0 0.0
          %1745 = vmatpush.msra.mxu0 0.0
          %1746 = vmatpush.msra.mxu0 0.0
          %1747 = vmatpush.msra.mxu0 0.0
          %1748 = vmatpush.msra.mxu0 0.0
          %1749 = vmatpush.msra.mxu0 0.0
          %1750 = vmatpush.msra.mxu0 0.0
          %1751 = vmatpush.msra.mxu0 0.0
          %1752 = vmatpush.msra.mxu0 0.0
          %1753 = vmatpush.msra.mxu0 0.0
          %1754 = vmatpush.msra.mxu0 0.0
          %1755 = vmatpush.msra.mxu0 %v1514
          %1756 = vmatmul.f32.gmra.mxu0 %v1493
          %v1757 = vpop.f32.mrf.mxu0
          %v1758 = vadd.f32 0.0, %v1757
          %1759 = vdwg.mxu0
          %1760 = vmatpush.msra.mxu0 0.0
          %1761 = vmatpush.msra.mxu0 0.0
          %1762 = vmatpush.msra.mxu0 0.0
          %1763 = vmatpush.msra.mxu0 0.0
          %1764 = vmatpush.msra.mxu0 0.0
          %1765 = vmatpush.msra.mxu0 0.0
          %1766 = vmatpush.msra.mxu0 0.0
          %1767 = vmatpush.msra.mxu0 0.0
          %1768 = vmatpush.msra.mxu0 0.0
          %1769 = vmatpush.msra.mxu0 0.0
          %1770 = vmatpush.msra.mxu0 0.0
          %1771 = vmatpush.msra.mxu0 0.0
          %1772 = vmatpush.msra.mxu0 0.0
          %1773 = vmatpush.msra.mxu0 0.0
          %1774 = vmatpush.msra.mxu0 0.0
          %1775 = vmatpush.msra.mxu0 %v1516
          %1776 = vmatmul.f32.gmra.mxu0 %v1493
          %v1777 = vpop.f32.mrf.mxu0
          %v1778 = vadd.f32 0.0, %v1777
          %1779 = vdwg.mxu0
          %1780 = vmatpush.msra.mxu0 0.0
          %1781 = vmatpush.msra.mxu0 0.0
          %1782 = vmatpush.msra.mxu0 0.0
          %1783 = vmatpush.msra.mxu0 0.0
          %1784 = vmatpush.msra.mxu0 0.0
          %1785 = vmatpush.msra.mxu0 0.0
          %1786 = vmatpush.msra.mxu0 0.0
          %1787 = vmatpush.msra.mxu0 0.0
          %1788 = vmatpush.msra.mxu0 0.0
          %1789 = vmatpush.msra.mxu0 0.0
          %1790 = vmatpush.msra.mxu0 0.0
          %1791 = vmatpush.msra.mxu0 0.0
          %1792 = vmatpush.msra.mxu0 0.0
          %1793 = vmatpush.msra.mxu0 0.0
          %1794 = vmatpush.msra.mxu0 0.0
          %1795 = vmatpush.msra.mxu0 %v1518
          %1796 = vmatmul.f32.gmra.mxu0 %v1493
          %v1797 = vpop.f32.mrf.mxu0
          %v1798 = vadd.f32 0.0, %v1797
          %1799 = vdwg.mxu0
          %1800 = vmatpush.msra.mxu0 0.0
          %1801 = vmatpush.msra.mxu0 0.0
          %1802 = vmatpush.msra.mxu0 0.0
          %1803 = vmatpush.msra.mxu0 0.0
          %1804 = vmatpush.msra.mxu0 0.0
          %1805 = vmatpush.msra.mxu0 0.0
          %1806 = vmatpush.msra.mxu0 0.0
          %1807 = vmatpush.msra.mxu0 0.0
          %1808 = vmatpush.msra.mxu0 0.0
          %1809 = vmatpush.msra.mxu0 0.0
          %1810 = vmatpush.msra.mxu0 0.0
          %1811 = vmatpush.msra.mxu0 0.0
          %1812 = vmatpush.msra.mxu0 0.0
          %1813 = vmatpush.msra.mxu0 0.0
          %1814 = vmatpush.msra.mxu0 0.0
          %1815 = vmatpush.msra.mxu0 %v1520
          %1816 = vmatmul.f32.gmra.mxu0 %v1493
          %v1817 = vpop.f32.mrf.mxu0
          %v1818 = vadd.f32 0.0, %v1817
          %1819 = vdwg.mxu0
          %1820 = vmatpush.msra.mxu0 0.0
          %1821 = vmatpush.msra.mxu0 0.0
          %1822 = vmatpush.msra.mxu0 0.0
          %1823 = vmatpush.msra.mxu0 0.0
          %1824 = vmatpush.msra.mxu0 0.0
          %1825 = vmatpush.msra.mxu0 0.0
          %1826 = vmatpush.msra.mxu0 0.0
          %1827 = vmatpush.msra.mxu0 0.0
          %1828 = vmatpush.msra.mxu0 0.0
          %1829 = vmatpush.msra.mxu0 0.0
          %1830 = vmatpush.msra.mxu0 0.0
          %1831 = vmatpush.msra.mxu0 0.0
          %1832 = vmatpush.msra.mxu0 0.0
          %1833 = vmatpush.msra.mxu0 0.0
          %1834 = vmatpush.msra.mxu0 0.0
          %1835 = vmatpush.msra.mxu0 %v1522
          %1836 = vmatmul.f32.gmra.mxu0 %v1493
          %v1837 = vpop.f32.mrf.mxu0
          %v1838 = vadd.f32 0.0, %v1837
          %1839 = vdwg.mxu0
          %1840 = vmatpush.msra.mxu0 0.0
          %1841 = vmatpush.msra.mxu0 0.0
          %1842 = vmatpush.msra.mxu0 0.0
          %1843 = vmatpush.msra.mxu0 0.0
          %1844 = vmatpush.msra.mxu0 0.0
          %1845 = vmatpush.msra.mxu0 0.0
          %1846 = vmatpush.msra.mxu0 0.0
          %1847 = vmatpush.msra.mxu0 0.0
          %1848 = vmatpush.msra.mxu0 0.0
          %1849 = vmatpush.msra.mxu0 0.0
          %1850 = vmatpush.msra.mxu0 0.0
          %1851 = vmatpush.msra.mxu0 0.0
          %1852 = vmatpush.msra.mxu0 0.0
          %1853 = vmatpush.msra.mxu0 0.0
          %1854 = vmatpush.msra.mxu0 0.0
          %1855 = vmatpush.msra.mxu0 %v1524
          %1856 = vmatmul.f32.gmra.mxu0 %v1493
          %v1857 = vpop.f32.mrf.mxu0
          %v1858 = vadd.f32 0.0, %v1857
          %1859 = vdwg.mxu0
          %1860 = vmatpush.msra.mxu0 0.0
          %1861 = vmatpush.msra.mxu0 0.0
          %1862 = vmatpush.msra.mxu0 0.0
          %1863 = vmatpush.msra.mxu0 0.0
          %1864 = vmatpush.msra.mxu0 0.0
          %1865 = vmatpush.msra.mxu0 0.0
          %1866 = vmatpush.msra.mxu0 0.0
          %1867 = vmatpush.msra.mxu0 0.0
          %1868 = vmatpush.msra.mxu0 0.0
          %1869 = vmatpush.msra.mxu0 0.0
          %1870 = vmatpush.msra.mxu0 0.0
          %1871 = vmatpush.msra.mxu0 0.0
          %1872 = vmatpush.msra.mxu0 0.0
          %1873 = vmatpush.msra.mxu0 0.0
          %1874 = vmatpush.msra.mxu0 0.0
          %1875 = vmatpush.msra.mxu0 %v1526
          %1876 = vmatmul.f32.gmra.mxu0 %v1493
          %v1877 = vpop.f32.mrf.mxu0
          %v1878 = vadd.f32 0.0, %v1877
          %1879 = vdwg.mxu0
          %1880 = vmatpush.msra.mxu0 0.0
          %1881 = vmatpush.msra.mxu0 0.0
          %1882 = vmatpush.msra.mxu0 0.0
          %1883 = vmatpush.msra.mxu0 0.0
          %1884 = vmatpush.msra.mxu0 0.0
          %1885 = vmatpush.msra.mxu0 0.0
          %1886 = vmatpush.msra.mxu0 0.0
          %1887 = vmatpush.msra.mxu0 0.0
          %1888 = vmatpush.msra.mxu0 0.0
          %1889 = vmatpush.msra.mxu0 0.0
          %1890 = vmatpush.msra.mxu0 0.0
          %1891 = vmatpush.msra.mxu0 0.0
          %1892 = vmatpush.msra.mxu0 0.0
          %1893 = vmatpush.msra.mxu0 0.0
          %1894 = vmatpush.msra.mxu0 0.0
          %1895 = vmatpush.msra.mxu0 %v1528
          %1896 = vmatmul.f32.gmra.mxu0 %v1493
          %v1897 = vpop.f32.mrf.mxu0
          %v1898 = vadd.f32 0.0, %v1897
          %1899 = vdwg.mxu0
          %1900 = vmatpush.msra.mxu0 0.0
          %1901 = vmatpush.msra.mxu0 0.0
          %1902 = vmatpush.msra.mxu0 0.0
          %1903 = vmatpush.msra.mxu0 0.0
          %1904 = vmatpush.msra.mxu0 0.0
          %1905 = vmatpush.msra.mxu0 0.0
          %1906 = vmatpush.msra.mxu0 0.0
          %1907 = vmatpush.msra.mxu0 0.0
          %1908 = vmatpush.msra.mxu0 0.0
          %1909 = vmatpush.msra.mxu0 0.0
          %1910 = vmatpush.msra.mxu0 0.0
          %1911 = vmatpush.msra.mxu0 0.0
          %1912 = vmatpush.msra.mxu0 0.0
          %1913 = vmatpush.msra.mxu0 0.0
          %1914 = vmatpush.msra.mxu0 0.0
          %1915 = vmatpush.msra.mxu0 %v1530
          %1916 = vmatmul.f32.gmra.mxu0 %v1493
          %v1917 = vpop.f32.mrf.mxu0
          %v1918 = vadd.f32 0.0, %v1917
          %1919 = vdwg.mxu0
          %1920 = vmatpush.msra.mxu0 0.0
          %1921 = vmatpush.msra.mxu0 0.0
          %1922 = vmatpush.msra.mxu0 0.0
          %1923 = vmatpush.msra.mxu0 0.0
          %1924 = vmatpush.msra.mxu0 0.0
          %1925 = vmatpush.msra.mxu0 0.0
          %1926 = vmatpush.msra.mxu0 0.0
          %1927 = vmatpush.msra.mxu0 0.0
          %1928 = vmatpush.msra.mxu0 0.0
          %1929 = vmatpush.msra.mxu0 0.0
          %1930 = vmatpush.msra.mxu0 0.0
          %1931 = vmatpush.msra.mxu0 0.0
          %1932 = vmatpush.msra.mxu0 0.0
          %1933 = vmatpush.msra.mxu0 0.0
          %1934 = vmatpush.msra.mxu0 0.0
          %1935 = vmatpush.msra.mxu0 %v1532
          %1936 = vmatmul.f32.gmra.mxu0 %v1493
          %v1937 = vpop.f32.mrf.mxu0
          %v1938 = vadd.f32 0.0, %v1937
          %1939 = vdwg.mxu0
          %1940 = vmatpush.msra.mxu0 0.0
          %1941 = vmatpush.msra.mxu0 0.0
          %1942 = vmatpush.msra.mxu0 0.0
          %1943 = vmatpush.msra.mxu0 0.0
          %1944 = vmatpush.msra.mxu0 0.0
          %1945 = vmatpush.msra.mxu0 0.0
          %1946 = vmatpush.msra.mxu0 0.0
          %1947 = vmatpush.msra.mxu0 0.0
          %1948 = vmatpush.msra.mxu0 0.0
          %1949 = vmatpush.msra.mxu0 0.0
          %1950 = vmatpush.msra.mxu0 0.0
          %1951 = vmatpush.msra.mxu0 0.0
          %1952 = vmatpush.msra.mxu0 0.0
          %1953 = vmatpush.msra.mxu0 0.0
          %1954 = vmatpush.msra.mxu0 0.0
          %1955 = vmatpush.msra.mxu0 %v1534
          %1956 = vmatmul.f32.gmra.mxu0 %v1493
          %v1957 = vpop.f32.mrf.mxu0
          %v1958 = vadd.f32 0.0, %v1957
          %1959 = vdwg.mxu0
          %1960 = vmatpush.msra.mxu0 0.0
          %1961 = vmatpush.msra.mxu0 0.0
          %1962 = vmatpush.msra.mxu0 0.0
          %1963 = vmatpush.msra.mxu0 0.0
          %1964 = vmatpush.msra.mxu0 0.0
          %1965 = vmatpush.msra.mxu0 0.0
          %1966 = vmatpush.msra.mxu0 0.0
          %1967 = vmatpush.msra.mxu0 0.0
          %1968 = vmatpush.msra.mxu0 0.0
          %1969 = vmatpush.msra.mxu0 0.0
          %1970 = vmatpush.msra.mxu0 0.0
          %1971 = vmatpush.msra.mxu0 0.0
          %1972 = vmatpush.msra.mxu0 0.0
          %1973 = vmatpush.msra.mxu0 0.0
          %1974 = vmatpush.msra.mxu0 0.0
          %1975 = vmatpush.msra.mxu0 %v1536
          %1976 = vmatmul.f32.gmra.mxu0 %v1493
          %v1977 = vpop.f32.mrf.mxu0
          %v1978 = vadd.f32 0.0, %v1977
          %1979 = vdwg.mxu0
          %1980 = vmatpush.msra.mxu0 0.0
          %1981 = vmatpush.msra.mxu0 0.0
          %1982 = vmatpush.msra.mxu0 0.0
          %1983 = vmatpush.msra.mxu0 0.0
          %1984 = vmatpush.msra.mxu0 0.0
          %1985 = vmatpush.msra.mxu0 0.0
          %1986 = vmatpush.msra.mxu0 0.0
          %1987 = vmatpush.msra.mxu0 0.0
          %1988 = vmatpush.msra.mxu0 0.0
          %1989 = vmatpush.msra.mxu0 0.0
          %1990 = vmatpush.msra.mxu0 0.0
          %1991 = vmatpush.msra.mxu0 0.0
          %1992 = vmatpush.msra.mxu0 0.0
          %1993 = vmatpush.msra.mxu0 0.0
          %1994 = vmatpush.msra.mxu0 0.0
          %1995 = vmatpush.msra.mxu0 %v1538
          %1996 = vmatmul.f32.gmra.mxu0 %v1493
          %v1997 = vpop.f32.mrf.mxu0
          %v1998 = vadd.f32 0.0, %v1997
          %1999 = vdwg.mxu0
          %2000 = vmatpush.msra.mxu0 0.0
          %2001 = vmatpush.msra.mxu0 0.0
          %2002 = vmatpush.msra.mxu0 0.0
          %2003 = vmatpush.msra.mxu0 0.0
          %2004 = vmatpush.msra.mxu0 0.0
          %2005 = vmatpush.msra.mxu0 0.0
          %2006 = vmatpush.msra.mxu0 0.0
          %2007 = vmatpush.msra.mxu0 0.0
          %2008 = vmatpush.msra.mxu0 0.0
          %2009 = vmatpush.msra.mxu0 0.0
          %2010 = vmatpush.msra.mxu0 0.0
          %2011 = vmatpush.msra.mxu0 0.0
          %2012 = vmatpush.msra.mxu0 0.0
          %2013 = vmatpush.msra.mxu0 0.0
          %2014 = vmatpush.msra.mxu0 0.0
          %2015 = vmatpush.msra.mxu0 %v1540
          %2016 = vmatmul.f32.gmra.mxu0 %v1493
          %v2017 = vpop.f32.mrf.mxu0
          %v2018 = vadd.f32 0.0, %v2017
          %2019 = vdwg.mxu0
          %2020 = vmatpush.msra.mxu0 0.0
          %2021 = vmatpush.msra.mxu0 0.0
          %2022 = vmatpush.msra.mxu0 0.0
          %2023 = vmatpush.msra.mxu0 0.0
          %2024 = vmatpush.msra.mxu0 0.0
          %2025 = vmatpush.msra.mxu0 0.0
          %2026 = vmatpush.msra.mxu0 0.0
          %2027 = vmatpush.msra.mxu0 0.0
          %2028 = vmatpush.msra.mxu0 0.0
          %2029 = vmatpush.msra.mxu0 0.0
          %2030 = vmatpush.msra.mxu0 0.0
          %2031 = vmatpush.msra.mxu0 0.0
          %2032 = vmatpush.msra.mxu0 0.0
          %2033 = vmatpush.msra.mxu0 0.0
          %2034 = vmatpush.msra.mxu0 0.0
          %2035 = vmatpush.msra.mxu0 %v1542
          %2036 = vmatmul.f32.gmra.mxu0 %v1493
          %v2037 = vpop.f32.mrf.mxu0
          %v2038 = vadd.f32 0.0, %v2037
          %2039 = vdwg.mxu0
          %2040 = vmatpush.msra.mxu0 0.0
          %2041 = vmatpush.msra.mxu0 0.0
          %2042 = vmatpush.msra.mxu0 0.0
          %2043 = vmatpush.msra.mxu0 0.0
          %2044 = vmatpush.msra.mxu0 0.0
          %2045 = vmatpush.msra.mxu0 0.0
          %2046 = vmatpush.msra.mxu0 0.0
          %2047 = vmatpush.msra.mxu0 0.0
          %2048 = vmatpush.msra.mxu0 0.0
          %2049 = vmatpush.msra.mxu0 0.0
          %2050 = vmatpush.msra.mxu0 0.0
          %2051 = vmatpush.msra.mxu0 0.0
          %2052 = vmatpush.msra.mxu0 0.0
          %2053 = vmatpush.msra.mxu0 0.0
          %2054 = vmatpush.msra.mxu0 0.0
          %2055 = vmatpush.msra.mxu0 %v1544
          %2056 = vmatmul.f32.gmra.mxu0 %v1493
          %v2057 = vpop.f32.mrf.mxu0
          %v2058 = vadd.f32 0.0, %v2057
          %2059 = vdwg.mxu0
          %2060 = vmatpush.msra.mxu0 0.0
          %2061 = vmatpush.msra.mxu0 0.0
          %2062 = vmatpush.msra.mxu0 0.0
          %2063 = vmatpush.msra.mxu0 0.0
          %2064 = vmatpush.msra.mxu0 0.0
          %2065 = vmatpush.msra.mxu0 0.0
          %2066 = vmatpush.msra.mxu0 0.0
          %2067 = vmatpush.msra.mxu0 0.0
          %2068 = vmatpush.msra.mxu0 0.0
          %2069 = vmatpush.msra.mxu0 0.0
          %2070 = vmatpush.msra.mxu0 0.0
          %2071 = vmatpush.msra.mxu0 0.0
          %2072 = vmatpush.msra.mxu0 0.0
          %2073 = vmatpush.msra.mxu0 0.0
          %2074 = vmatpush.msra.mxu0 0.0
          %2075 = vmatpush.msra.mxu0 %v1546
          %2076 = vmatmul.f32.gmra.mxu0 %v1493
          %v2077 = vpop.f32.mrf.mxu0
          %v2078 = vadd.f32 0.0, %v2077
          %2079 = vdwg.mxu0
          %2080 = vmatpush.msra.mxu0 0.0
          %2081 = vmatpush.msra.mxu0 0.0
          %2082 = vmatpush.msra.mxu0 0.0
          %2083 = vmatpush.msra.mxu0 0.0
          %2084 = vmatpush.msra.mxu0 0.0
          %2085 = vmatpush.msra.mxu0 0.0
          %2086 = vmatpush.msra.mxu0 0.0
          %2087 = vmatpush.msra.mxu0 0.0
          %2088 = vmatpush.msra.mxu0 0.0
          %2089 = vmatpush.msra.mxu0 0.0
          %2090 = vmatpush.msra.mxu0 0.0
          %2091 = vmatpush.msra.mxu0 0.0
          %2092 = vmatpush.msra.mxu0 0.0
          %2093 = vmatpush.msra.mxu0 0.0
          %2094 = vmatpush.msra.mxu0 0.0
          %2095 = vmatpush.msra.mxu0 %v1548
          %2096 = vmatmul.f32.gmra.mxu0 %v1493
          %v2097 = vpop.f32.mrf.mxu0
          %v2098 = vadd.f32 0.0, %v2097
          %2099 = vdwg.mxu0
          %2100 = vmatpush.msra.mxu0 0.0
          %2101 = vmatpush.msra.mxu0 0.0
          %2102 = vmatpush.msra.mxu0 0.0
          %2103 = vmatpush.msra.mxu0 0.0
          %2104 = vmatpush.msra.mxu0 0.0
          %2105 = vmatpush.msra.mxu0 0.0
          %2106 = vmatpush.msra.mxu0 0.0
          %2107 = vmatpush.msra.mxu0 0.0
          %2108 = vmatpush.msra.mxu0 0.0
          %2109 = vmatpush.msra.mxu0 0.0
          %2110 = vmatpush.msra.mxu0 0.0
          %2111 = vmatpush.msra.mxu0 0.0
          %2112 = vmatpush.msra.mxu0 0.0
          %2113 = vmatpush.msra.mxu0 0.0
          %2114 = vmatpush.msra.mxu0 0.0
          %2115 = vmatpush.msra.mxu0 %v1550
          %2116 = vmatmul.f32.gmra.mxu0 %v1493
          %v2117 = vpop.f32.mrf.mxu0
          %v2118 = vadd.f32 0.0, %v2117
          %2119 = vdwg.mxu0
          %2120 = vmatpush.msra.mxu0 0.0
          %2121 = vmatpush.msra.mxu0 0.0
          %2122 = vmatpush.msra.mxu0 0.0
          %2123 = vmatpush.msra.mxu0 0.0
          %2124 = vmatpush.msra.mxu0 0.0
          %2125 = vmatpush.msra.mxu0 0.0
          %2126 = vmatpush.msra.mxu0 0.0
          %2127 = vmatpush.msra.mxu0 0.0
          %2128 = vmatpush.msra.mxu0 0.0
          %2129 = vmatpush.msra.mxu0 0.0
          %2130 = vmatpush.msra.mxu0 0.0
          %2131 = vmatpush.msra.mxu0 0.0
          %2132 = vmatpush.msra.mxu0 0.0
          %2133 = vmatpush.msra.mxu0 0.0
          %2134 = vmatpush.msra.mxu0 0.0
          %2135 = vmatpush.msra.mxu0 %v1552
          %2136 = vmatmul.f32.gmra.mxu0 %v1493
          %v2137 = vpop.f32.mrf.mxu0
          %v2138 = vadd.f32 0.0, %v2137
          %2139 = vdwg.mxu0
          %2140 = vmatpush.msra.mxu0 0.0
          %2141 = vmatpush.msra.mxu0 0.0
          %2142 = vmatpush.msra.mxu0 0.0
          %2143 = vmatpush.msra.mxu0 0.0
          %2144 = vmatpush.msra.mxu0 0.0
          %2145 = vmatpush.msra.mxu0 0.0
          %2146 = vmatpush.msra.mxu0 0.0
          %2147 = vmatpush.msra.mxu0 0.0
          %2148 = vmatpush.msra.mxu0 0.0
          %2149 = vmatpush.msra.mxu0 0.0
          %2150 = vmatpush.msra.mxu0 0.0
          %2151 = vmatpush.msra.mxu0 0.0
          %2152 = vmatpush.msra.mxu0 0.0
          %2153 = vmatpush.msra.mxu0 0.0
          %2154 = vmatpush.msra.mxu0 0.0
          %2155 = vmatpush.msra.mxu0 %v1554
          %2156 = vmatmul.f32.gmra.mxu0 %v1493
          %v2157 = vpop.f32.mrf.mxu0
          %v2158 = vadd.f32 0.0, %v2157
          %2159 = vdwg.mxu0
          %2160 = vmatpush.msra.mxu0 0.0
          %2161 = vmatpush.msra.mxu0 0.0
          %2162 = vmatpush.msra.mxu0 0.0
          %2163 = vmatpush.msra.mxu0 0.0
          %2164 = vmatpush.msra.mxu0 0.0
          %2165 = vmatpush.msra.mxu0 0.0
          %2166 = vmatpush.msra.mxu0 0.0
          %2167 = vmatpush.msra.mxu0 0.0
          %2168 = vmatpush.msra.mxu0 0.0
          %2169 = vmatpush.msra.mxu0 0.0
          %2170 = vmatpush.msra.mxu0 0.0
          %2171 = vmatpush.msra.mxu0 0.0
          %2172 = vmatpush.msra.mxu0 0.0
          %2173 = vmatpush.msra.mxu0 0.0
          %2174 = vmatpush.msra.mxu0 0.0
          %2175 = vmatpush.msra.mxu0 %v1556
          %2176 = vmatmul.f32.gmra.mxu0 %v1493
          %v2177 = vpop.f32.mrf.mxu0
          %v2178 = vadd.f32 0.0, %v2177
          %2179 = vdwg.mxu0
          %2180 = vmatpush.msra.mxu0 0.0
          %2181 = vmatpush.msra.mxu0 0.0
          %2182 = vmatpush.msra.mxu0 0.0
          %2183 = vmatpush.msra.mxu0 0.0
          %2184 = vmatpush.msra.mxu0 0.0
          %2185 = vmatpush.msra.mxu0 0.0
          %2186 = vmatpush.msra.mxu0 0.0
          %2187 = vmatpush.msra.mxu0 0.0
          %2188 = vmatpush.msra.mxu0 0.0
          %2189 = vmatpush.msra.mxu0 0.0
          %2190 = vmatpush.msra.mxu0 0.0
          %2191 = vmatpush.msra.mxu0 0.0
          %2192 = vmatpush.msra.mxu0 0.0
          %2193 = vmatpush.msra.mxu0 0.0
          %2194 = vmatpush.msra.mxu0 0.0
          %2195 = vmatpush.msra.mxu0 %v1558
          %2196 = vmatmul.f32.gmra.mxu0 %v1493
          %v2197 = vpop.f32.mrf.mxu0
          %v2198 = vadd.f32 0.0, %v2197
          %2199 = vdwg.mxu0
          %v2200 = vld [vmem:[#allocation4] sm:$0xff]
          %2202 = vset.pattern.permute.xlu0 0
          %2203 = vperm.xlu0 %2202, %v2200
          %v2204 = vpop.permute.xlu0 %2203
          %v2206 = vmul.f32 %v1578, %v2204
          %v2207 = vmul.f32 %v1598, %v2204
          %v2208 = vmul.f32 %v1618, %v2204
          %v2209 = vmul.f32 %v1638, %v2204
          %v2210 = vmul.f32 %v1658, %v2204
          %v2211 = vmul.f32 %v1678, %v2204
          %v2212 = vmul.f32 %v1698, %v2204
          %v2213 = vmul.f32 %v1718, %v2204
          %v2214 = vmul.f32 %v1738, %v2204
          %v2215 = vmul.f32 %v1758, %v2204
          %v2216 = vmul.f32 %v1778, %v2204
          %v2217 = vmul.f32 %v1798, %v2204
          %v2218 = vmul.f32 %v1818, %v2204
          %v2219 = vmul.f32 %v1838, %v2204
          %v2220 = vmul.f32 %v1858, %v2204
          %v2221 = vmul.f32 %v1878, %v2204
          %v2222 = vmul.f32 %v1898, %v2204
          %v2223 = vmul.f32 %v1918, %v2204
          %v2224 = vmul.f32 %v1938, %v2204
          %v2225 = vmul.f32 %v1958, %v2204
          %v2226 = vmul.f32 %v1978, %v2204
          %v2227 = vmul.f32 %v1998, %v2204
          %v2228 = vmul.f32 %v2018, %v2204
          %v2229 = vmul.f32 %v2038, %v2204
          %v2230 = vmul.f32 %v2058, %v2204
          %v2231 = vmul.f32 %v2078, %v2204
          %v2232 = vmul.f32 %v2098, %v2204
          %v2233 = vmul.f32 %v2118, %v2204
          %v2234 = vmul.f32 %v2138, %v2204
          %v2235 = vmul.f32 %v2158, %v2204
          %v2236 = vmul.f32 %v2178, %v2204
          %v2237 = vmul.f32 %v2198, %v2204
          %v2238 = vld [vmem:[#allocation5] sm:$0xff]
          %2240 = vset.pattern.permute.xlu0 0
          %2241 = vperm.xlu0 %2240, %v2238
          %v2242 = vpop.permute.xlu0 %2241
          %v2244 = vadd.f32 %v2206, %v2242
          %v2245 = vadd.f32 %v2207, %v2242
          %v2246 = vadd.f32 %v2208, %v2242
          %v2247 = vadd.f32 %v2209, %v2242
          %v2248 = vadd.f32 %v2210, %v2242
          %v2249 = vadd.f32 %v2211, %v2242
          %v2250 = vadd.f32 %v2212, %v2242
          %v2251 = vadd.f32 %v2213, %v2242
          %v2252 = vadd.f32 %v2214, %v2242
          %v2253 = vadd.f32 %v2215, %v2242
          %v2254 = vadd.f32 %v2216, %v2242
          %v2255 = vadd.f32 %v2217, %v2242
          %v2256 = vadd.f32 %v2218, %v2242
          %v2257 = vadd.f32 %v2219, %v2242
          %v2258 = vadd.f32 %v2220, %v2242
          %v2259 = vadd.f32 %v2221, %v2242
          %v2260 = vadd.f32 %v2222, %v2242
          %v2261 = vadd.f32 %v2223, %v2242
          %v2262 = vadd.f32 %v2224, %v2242
          %v2263 = vadd.f32 %v2225, %v2242
          %v2264 = vadd.f32 %v2226, %v2242
          %v2265 = vadd.f32 %v2227, %v2242
          %v2266 = vadd.f32 %v2228, %v2242
          %v2267 = vadd.f32 %v2229, %v2242
          %v2268 = vadd.f32 %v2230, %v2242
          %v2269 = vadd.f32 %v2231, %v2242
          %v2270 = vadd.f32 %v2232, %v2242
          %v2271 = vadd.f32 %v2233, %v2242
          %v2272 = vadd.f32 %v2234, %v2242
          %v2273 = vadd.f32 %v2235, %v2242
          %v2274 = vadd.f32 %v2236, %v2242
          %v2275 = vadd.f32 %v2237, %v2242
          %vm2276 = vcmp.ge.f32.partialorder %v2244, 0.0
          %vm2277 = vcmp.ge.f32.partialorder %v2245, 0.0
          %vm2278 = vcmp.ge.f32.partialorder %v2246, 0.0
          %vm2279 = vcmp.ge.f32.partialorder %v2247, 0.0
          %vm2280 = vcmp.ge.f32.partialorder %v2248, 0.0
          %vm2281 = vcmp.ge.f32.partialorder %v2249, 0.0
          %vm2282 = vcmp.ge.f32.partialorder %v2250, 0.0
          %vm2283 = vcmp.ge.f32.partialorder %v2251, 0.0
          %vm2284 = vcmp.ge.f32.partialorder %v2252, 0.0
          %vm2285 = vcmp.ge.f32.partialorder %v2253, 0.0
          %vm2286 = vcmp.ge.f32.partialorder %v2254, 0.0
          %vm2287 = vcmp.ge.f32.partialorder %v2255, 0.0
          %vm2288 = vcmp.ge.f32.partialorder %v2256, 0.0
          %vm2289 = vcmp.ge.f32.partialorder %v2257, 0.0
          %vm2290 = vcmp.ge.f32.partialorder %v2258, 0.0
          %vm2291 = vcmp.ge.f32.partialorder %v2259, 0.0
          %vm2292 = vcmp.ge.f32.partialorder %v2260, 0.0
          %vm2293 = vcmp.ge.f32.partialorder %v2261, 0.0
          %vm2294 = vcmp.ge.f32.partialorder %v2262, 0.0
          %vm2295 = vcmp.ge.f32.partialorder %v2263, 0.0
          %vm2296 = vcmp.ge.f32.partialorder %v2264, 0.0
          %vm2297 = vcmp.ge.f32.partialorder %v2265, 0.0
          %vm2298 = vcmp.ge.f32.partialorder %v2266, 0.0
          %vm2299 = vcmp.ge.f32.partialorder %v2267, 0.0
          %vm2300 = vcmp.ge.f32.partialorder %v2268, 0.0
          %vm2301 = vcmp.ge.f32.partialorder %v2269, 0.0
          %vm2302 = vcmp.ge.f32.partialorder %v2270, 0.0
          %vm2303 = vcmp.ge.f32.partialorder %v2271, 0.0
          %vm2304 = vcmp.ge.f32.partialorder %v2272, 0.0
          %vm2305 = vcmp.ge.f32.partialorder %v2273, 0.0
          %vm2306 = vcmp.ge.f32.partialorder %v2274, 0.0
          %vm2307 = vcmp.ge.f32.partialorder %v2275, 0.0
          %v2308 = vmul.f32 %v2244, 0.01
          %v2309 = vmul.f32 %v2245, 0.01
          %v2310 = vmul.f32 %v2246, 0.01
          %v2311 = vmul.f32 %v2247, 0.01
          %v2312 = vmul.f32 %v2248, 0.01
          %v2313 = vmul.f32 %v2249, 0.01
          %v2314 = vmul.f32 %v2250, 0.01
          %v2315 = vmul.f32 %v2251, 0.01
          %v2316 = vmul.f32 %v2252, 0.01
          %v2317 = vmul.f32 %v2253, 0.01
          %v2318 = vmul.f32 %v2254, 0.01
          %v2319 = vmul.f32 %v2255, 0.01
          %v2320 = vmul.f32 %v2256, 0.01
          %v2321 = vmul.f32 %v2257, 0.01
          %v2322 = vmul.f32 %v2258, 0.01
          %v2323 = vmul.f32 %v2259, 0.01
          %v2324 = vmul.f32 %v2260, 0.01
          %v2325 = vmul.f32 %v2261, 0.01
          %v2326 = vmul.f32 %v2262, 0.01
          %v2327 = vmul.f32 %v2263, 0.01
          %v2328 = vmul.f32 %v2264, 0.01
          %v2329 = vmul.f32 %v2265, 0.01
          %v2330 = vmul.f32 %v2266, 0.01
          %v2331 = vmul.f32 %v2267, 0.01
          %v2332 = vmul.f32 %v2268, 0.01
          %v2333 = vmul.f32 %v2269, 0.01
          %v2334 = vmul.f32 %v2270, 0.01
          %v2335 = vmul.f32 %v2271, 0.01
          %v2336 = vmul.f32 %v2272, 0.01
          %v2337 = vmul.f32 %v2273, 0.01
          %v2338 = vmul.f32 %v2274, 0.01
          %v2339 = vmul.f32 %v2275, 0.01
          %v2340 = vsel %vm2276, %v2244, %v2308
          %v2341 = vsel %vm2277, %v2245, %v2309
          %v2342 = vsel %vm2278, %v2246, %v2310
          %v2343 = vsel %vm2279, %v2247, %v2311
          %v2344 = vsel %vm2280, %v2248, %v2312
          %v2345 = vsel %vm2281, %v2249, %v2313
          %v2346 = vsel %vm2282, %v2250, %v2314
          %v2347 = vsel %vm2283, %v2251, %v2315
          %v2348 = vsel %vm2284, %v2252, %v2316
          %v2349 = vsel %vm2285, %v2253, %v2317
          %v2350 = vsel %vm2286, %v2254, %v2318
          %v2351 = vsel %vm2287, %v2255, %v2319
          %v2352 = vsel %vm2288, %v2256, %v2320
          %v2353 = vsel %vm2289, %v2257, %v2321
          %v2354 = vsel %vm2290, %v2258, %v2322
          %v2355 = vsel %vm2291, %v2259, %v2323
          %v2356 = vsel %vm2292, %v2260, %v2324
          %v2357 = vsel %vm2293, %v2261, %v2325
          %v2358 = vsel %vm2294, %v2262, %v2326
          %v2359 = vsel %vm2295, %v2263, %v2327
          %v2360 = vsel %vm2296, %v2264, %v2328
          %v2361 = vsel %vm2297, %v2265, %v2329
          %v2362 = vsel %vm2298, %v2266, %v2330
          %v2363 = vsel %vm2299, %v2267, %v2331
          %v2364 = vsel %vm2300, %v2268, %v2332
          %v2365 = vsel %vm2301, %v2269, %v2333
          %v2366 = vsel %vm2302, %v2270, %v2334
          %v2367 = vsel %vm2303, %v2271, %v2335
          %v2368 = vsel %vm2304, %v2272, %v2336
          %v2369 = vsel %vm2305, %v2273, %v2337
          %v2370 = vsel %vm2306, %v2274, %v2338
          %v2371 = vsel %vm2307, %v2275, %v2339
          %2372 = vst [vmem:[%s215] sm:$0xff] %v2340
          %2373 = vst [vmem:[%s215 + $0x8] sm:$0xff] %v2341
          %2374 = vst [vmem:[%s215 + $0x10] sm:$0xff] %v2342
          %2375 = vst [vmem:[%s215 + $0x18] sm:$0xff] %v2343
          %2376 = vst [vmem:[%s215 + $0x20] sm:$0xff] %v2344
          %2377 = vst [vmem:[%s215 + $0x28] sm:$0xff] %v2345
          %2378 = vst [vmem:[%s215 + $0x30] sm:$0xff] %v2346
          %2379 = vst [vmem:[%s215 + $0x38] sm:$0xff] %v2347
          %2380 = vst [vmem:[%s215 + $0x40] sm:$0xff] %v2348
          %2381 = vst [vmem:[%s215 + $0x48] sm:$0xff] %v2349
          %2382 = vst [vmem:[%s215 + $0x50] sm:$0xff] %v2350
          %2383 = vst [vmem:[%s215 + $0x58] sm:$0xff] %v2351
          %2384 = vst [vmem:[%s215 + $0x60] sm:$0xff] %v2352
          %2385 = vst [vmem:[%s215 + $0x68] sm:$0xff] %v2353
          %2386 = vst [vmem:[%s215 + $0x70] sm:$0xff] %v2354
          %2387 = vst [vmem:[%s215 + $0x78] sm:$0xff] %v2355
          %2388 = vst [vmem:[%s215 + $0x80] sm:$0xff] %v2356
          %2389 = vst [vmem:[%s215 + $0x88] sm:$0xff] %v2357
          %2390 = vst [vmem:[%s215 + $0x90] sm:$0xff] %v2358
          %2391 = vst [vmem:[%s215 + $0x98] sm:$0xff] %v2359
          %2392 = vst [vmem:[%s215 + $0xa0] sm:$0xff] %v2360
          %2393 = vst [vmem:[%s215 + $0xa8] sm:$0xff] %v2361
          %2394 = vst [vmem:[%s215 + $0xb0] sm:$0xff] %v2362
          %2395 = vst [vmem:[%s215 + $0xb8] sm:$0xff] %v2363
          %2396 = vst [vmem:[%s215 + $0xc0] sm:$0xff] %v2364
          %2397 = vst [vmem:[%s215 + $0xc8] sm:$0xff] %v2365
          %2398 = vst [vmem:[%s215 + $0xd0] sm:$0xff] %v2366
          %2399 = vst [vmem:[%s215 + $0xd8] sm:$0xff] %v2367
          %2400 = vst [vmem:[%s215 + $0xe0] sm:$0xff] %v2368
          %2401 = vst [vmem:[%s215 + $0xe8] sm:$0xff] %v2369
          %2402 = vst [vmem:[%s215 + $0xf0] sm:$0xff] %v2370
          %2403 = vst [vmem:[%s215 + $0xf8] sm:$0xff] %v2371
        $region48: #{tpu_custom_call.1} parent=31 // pred_fallthru
          _
        %s2404 = sand.u32 %s121, 1
        %s2405 = scalar_lea.sflag [#allocation8], %s2404
        %s2406 = sand.u32 %s121, 1
        %s2407 = smul.addr %s2406, 256
        %s2408 = scalar_lea.vmem [#allocation9], %s2407
        // Predicated region
        $region53: #{tpu_custom_call.1} parent=31 // pred_check
          %p2409 = pneg %p131
        $region54: #{tpu_custom_call.1} parent=31 // pred_check_branch
          %2411 = sbr.rel (%p2409) target = $region56
        $region55: #{tpu_custom_call.1} parent=31 // pred_region
          %s2412 = smul.u32 %s27, %s26
          %s2413 = smul.u32 32, %s2412
          %2415 = vsyncadd %s2405, 0
          %s2416 = smul.addr %s25, 32
          %s2417 = sadd.s32 %s2413, %s2416
          %s2418 = smul.addr %s2417, 8
          %s2419 = scalar_lea.hbm %s3, %s2418
          %s2421 = sshll.u32 %s2408, 4
          %s2422 = int_to_ptr.vmem [resolvable:$true] %s2421
          %s2423 = sshll.u32 %s2419, 4
          %s2424 = int_to_ptr.hbm [resolvable:$true] %s2423
          %2426 = dma.vmem_to_hbm [thread:$0]  %s2422, 4096, %s2424, %s2405
        $region56: #{tpu_custom_call.1} parent=31 // pred_fallthru
          _
      $region32: #{tpu_custom_call.1} parent=5 // pred_fallthru
        _
      %p2427 = scmp.le.s32.totalorder 2, %s15
      // Predicated region
      $region57: #{tpu_custom_call.1} parent=5 // pred_check
        %p2428 = pneg %p2427
      $region58: #{tpu_custom_call.1} parent=5 // pred_check_branch
        %2430 = sbr.rel (%p2428) target = $region60
      $region59: #{tpu_custom_call.1} parent=5 // pred_region
        %s2431 = ssub.s32 %s15, 2
        // Predicated region
        $region61: #{tpu_custom_call.1} parent=59 // pred_check
          %p2432 = pneg %p137
        $region62: #{tpu_custom_call.1} parent=59 // pred_check_branch
          %2434 = sbr.rel (%p2432) target = $region64
        $region63: #{tpu_custom_call.1} parent=59 // pred_region
          %s2435 = sand.u32 %s122, 1
          %s2436 = scalar_lea.sflag [#allocation8], %s2435
          %s2437 = sand.u32 %s122, 1
          %s2438 = smul.addr %s2437, 256
          %s2439 = scalar_lea.vmem [#allocation9], %s2438
          %2441 = dma.done %s2436, 4096
        $region64: #{tpu_custom_call.1} parent=59 // pred_fallthru
          _
      $region60: #{tpu_custom_call.1} parent=5 // pred_fallthru
        _
    $region6: #{tpu_custom_call.1} parent=1 // loop_footer
      %s19 = sadd.s32 1, %s15
    $region7: #{tpu_custom_call.1} parent=1 // loop_footer_branch
      %14 = sbr.rel target = $region3
    $region8: #{tpu_custom_call.1} parent=1 // loop_exit
      _
    %2442 = vsyncpa [#allocation7], 1
    %s2443 = scalar_lea.sflag [#allocation7], 1
    %2444 = vsyncpa %s2443, 1
    %2445 = vsyncpa [#allocation8], 1
    %s2446 = scalar_lea.sflag [#allocation8], 1
    %2447 = vsyncpa %s2446, 1

</llo_original>
